<compile_context>
chip_gen: v5e
topology: v5e:2x2
jax: 0.10.0
libtpu: 0.0.40
codegen_flags: <defaults>
</compile_context>

<pallas_src>
import jax
import jax.numpy as jnp
from jax import lax
from jax.experimental import pallas as pl
from jax.experimental.pallas import tpu as pltpu

EPS = 1e-8


# ----------------------------------- kernel -----------------------------------

def _layernorm_cols(h, gamma, beta, inv_n):
    """One-pass LayerNorm over the feature axis (axis 0) of an [N, TL] slab.

    sum(h) and sum(h*h) are computed together (var = E[h^2] - mu^2): one fewer
    elementwise pass and one fewer cross-sublane reduction than the two-pass
    formula. f32 accumulation; variance clamped at 0 for numerical safety.
    gamma / beta are [N, 1] and broadcast over the position (lane) axis.
    """
    mu = jnp.sum(h, axis=0, keepdims=True) * inv_n        # [1, TL]
    ex2 = jnp.sum(h * h, axis=0, keepdims=True) * inv_n   # [1, TL]
    var = jnp.maximum(ex2 - mu * mu, 0.0)
    return (h - mu) * lax.rsqrt(var + EPS) * gamma + beta


def dcb_kernel(x_ref, wi_ref, we_ref, p_ref, o_ref):
    # x_ref : [Bblk, N, TL] tile (features on sublanes, positions on lanes)
    # wi/we : [N, N] torch-style [out, in] weights (Out = W @ X is exactly y = xW^T)
    # p_ref : [N, 8] fused per-channel params:
    #         cols 0..5 = b_intra, g_intra, beta_intra, b_inter, g_inter, beta_inter
    wi = wi_ref[...]
    we = we_ref[...]
    p = p_ref[...].astype(jnp.float32)
    bi, gi, bti = p[:, 0:1], p[:, 1:2], p[:, 2:3]
    be, ge, bte = p[:, 3:4], p[:, 4:5], p[:, 5:6]
    inv_n = 1.0 / x_ref.shape[1]

    # Small static unroll over the batch sub-block (Bblk is 1 unless L is small).
    for i in range(x_ref.shape[0]):
        v = x_ref[i].astype(jnp.float32)                               # [N, TL]

        # ---- intra path: linear -> layernorm -> skip(+v) ----
        h = jnp.dot(wi, v, preferred_element_type=jnp.float32,
                    precision=lax.Precision.DEFAULT) + bi
        h = _layernorm_cols(h, gi, bti, inv_n) + v

        # ---- inter path: linear -> layernorm -> skip(+v, original input) ----
        g = jnp.dot(we, h, preferred_element_type=jnp.float32,
                    precision=lax.Precision.DEFAULT) + be
        g = _layernorm_cols(g, ge, bte, inv_n) + v

        o_ref[i] = g.astype(o_ref.dtype)


# ----------------------------------- wrapper -----------------------------------

def _vmem_capacity_bytes():
    """Generation-aware per-core VMEM capacity; conservative fallback if unknown."""
    try:
        cap = int(pltpu.get_tpu_info().vmem_capacity_bytes)
        if cap > 0:
            return min(cap, 128 << 20)
    except Exception:
        pass
    return 64 << 20  # smallest modern per-core VMEM (v7x); safe everywhere


def _make_pvec(params):
    """Fuse the six (N,) per-channel vectors into one (N, 8) slab (one DMA stream)."""
    zeros = jnp.zeros_like(params["b_intra"])
    return jnp.stack(
        [params["b_intra"], params["g_intra"], params["beta_intra"],
         params["b_inter"], params["g_inter"], params["beta_inter"],
         zeros, zeros],
        axis=1,
    )


def prepare_params(params):
    """Hoist the fused param-slab construction out of the per-call forward."""
    out = dict(params)
    out["pvec"] = _make_pvec(params)
    return out


def _build_and_call(x3d, w_i, w_e, pvec, *, Bblk, tl, nb, n_l, single_buffer_resident):
    B, N, L = x3d.shape
    itemsize = x3d.dtype.itemsize
    n_res = 1 if single_buffer_resident else 2

    # VMEM requirement: double-buffered x/out tiles + resident weights/param slab.
    est = itemsize * (2 * 2 * Bblk * N * tl + n_res * (2 * N * N + 8 * N))
    cap = _vmem_capacity_bytes()
    budget = int(0.72 * cap)
    vmem_limit = int(min(max(budget, est + (2 << 20)), cap))   # never below requirement

    tile_map = lambda b, l: (b, 0, l)    # x / out tile: batch block b, full N, pos tile l
    const_map = lambda b, l: (0, 0)      # resident weights / params

    if single_buffer_resident:
        w_spec_i = pl.BlockSpec((N, N), const_map, pipeline_mode=pl.Buffered(1))
        w_spec_e = pl.BlockSpec((N, N), const_map, pipeline_mode=pl.Buffered(1))
        p_spec = pl.BlockSpec((N, 8), const_map, pipeline_mode=pl.Buffered(1))
    else:
        w_spec_i = pl.BlockSpec((N, N), const_map)
        w_spec_e = pl.BlockSpec((N, N), const_map)
        p_spec = pl.BlockSpec((N, 8), const_map)

    return pl.pallas_call(
        dcb_kernel,
        out_shape=jax.ShapeDtypeStruct((B, N, L), x3d.dtype),
        grid_spec=pltpu.PrefetchScalarGridSpec(
            num_scalar_prefetch=0,
            grid=(nb, n_l),
            in_specs=[
                pl.BlockSpec((Bblk, N, tl), tile_map),   # x tile [Bblk, N, tl]
                w_spec_i,                                # W_intra (torch [out, in])
                w_spec_e,                                # W_inter (torch [out, in])
                p_spec,                                  # fused per-channel params
            ],
            out_specs=pl.BlockSpec((Bblk, N, tl), tile_map),
        ),
        compiler_params=pltpu.CompilerParams(
            dimension_semantics=("parallel", "parallel"),
            vmem_limit_bytes=vmem_limit,
        ),
    )(x3d, w_i, w_e, pvec)


def dual_computation_block(x, params, *, target_tile_bytes=2 << 20, max_batch_block=8):
    """x: [B, N, K, S] float32.  params: dict of weights (see _init_params / prepare_params)."""
    B, N, K, S = x.shape
    L = K * S
    itemsize = x.dtype.itemsize

    # Free reshape (K, S are trailing contiguous dims) — no HBM data movement.
    x3d = x.reshape(B, N, L)

    pvec = params.get("pvec")
    if pvec is None:
        pvec = _make_pvec(params)

    # ---- VMEM budget (generation aware) bounds the streaming tile size ----
    cap = _vmem_capacity_bytes()
    budget = int(0.72 * cap)
    resident_bytes = itemsize * (2 * N * N + 8 * N)
    stream_budget = max(budget - resident_bytes - (2 << 20), 1 << 20)
    max_tile_elems = stream_budget // (4 * itemsize)   # x + out, double-buffered each

    # ---- position-tile sized by BYTES (~target_tile_bytes of x per grid step) ----
    lanes_target = max(128, target_tile_bytes // (N * itemsize))
    lanes_target = min(lanes_target, max(128, max_tile_elems // N))
    tl_want = max(128, (lanes_target // 128) * 128)

    if tl_want < L:
        # Case A: tile over positions (lane-dense, byte-sized steps).
        Bblk = 1
        tl = tl_want
        # v7x: prefer an even total step count so both TensorCores get equal work.
        if (B * pl.cdiv(L, tl)) % 2 == 1:
            for cand in (tl - 128, tl + 128, tl - 256, tl + 256):
                if cand >= 128 and cand * N <= max_tile_elems and \
                        (B * pl.cdiv(L, cand)) % 2 == 0:
                    tl = cand
                    break
        n_l = pl.cdiv(L, tl)
    else:
        # Case B: L is small — fold several batch rows into one grid step instead of
        # shrinking the tile (amortizes the ~0.35 us per-step overhead).
        tl = L
        Bblk = max(1, min(B, max_batch_block, lanes_target // max(L, 1)))
        while Bblk > 1 and Bblk * N * L > max_tile_elems:
            Bblk -= 1
        n_l = 1
    nb = pl.cdiv(B, Bblk)

    try:
        out3d = _build_and_call(x3d, params["w_intra"], params["w_inter"], pvec,
                                Bblk=Bblk, tl=tl, nb=nb, n_l=n_l,
                                single_buffer_resident=True)
    except Exception:
        # pipeline_mode=pl.Buffered(1) not supported by this jax version:
        # fall back to default double-buffering of the (tiny) resident blocks.
        out3d = _build_and_call(x3d, params["w_intra"], params["w_inter"], pvec,
                                Bblk=Bblk, tl=tl, nb=nb, n_l=n_l,
                                single_buffer_resident=False)

    # Free reshape back to the PyTorch layout [B, N, K, S].
    return out3d.reshape(B, N, K, S)


# ----------------------------- pure-JAX reference -----------------------------

def _layernorm_last(h, gamma, beta):
    mu = jnp.mean(h, axis=-1, keepdims=True)
    var = jnp.mean((h - mu) ** 2, axis=-1, keepdims=True)
    return (h - mu) * lax.rsqrt(var + EPS) * gamma + beta


def _reference(x, params):
    """Pure-JAX transcription of the PyTorch forward (identity intra/inter mdl)."""
    B, N, K, S = x.shape
    # intra path
    intra = jnp.transpose(x, (0, 3, 2, 1)).reshape(B * S, K, N)
    intra = intra @ params["w_intra"].T + params["b_intra"]
    intra = intra.reshape(B, S, K, N)
    intra = _layernorm_last(intra, params["g_intra"], params["beta_intra"])
    intra = jnp.transpose(intra, (0, 2, 1, 3))
    intra = intra + jnp.transpose(x, (0, 2, 3, 1))
    # inter path
    inter = intra.reshape(B * K, S, N)
    inter = inter @ params["w_inter"].T + params["b_inter"]
    inter = inter.reshape(B, K, S, N)
    inter = _layernorm_last(inter, params["g_inter"], params["beta_inter"])
    inter = jnp.transpose(inter, (0, 3, 1, 2))
    return inter + x


def _init_params(key, N):
    ks = jax.random.split(key, 8)
    s = 1.0 / jnp.sqrt(N)
    return {
        # torch-style [out_features, in_features]
        "w_intra": jax.random.uniform(ks[0], (N, N), jnp.float32, -s, s),
        "b_intra": jax.random.uniform(ks[1], (N,), jnp.float32, -s, s),
        "w_inter": jax.random.uniform(ks[2], (N, N), jnp.float32, -s, s),
        "b_inter": jax.random.uniform(ks[3], (N,), jnp.float32, -s, s),
        # LayerNorm affine params (torch default is ones/zeros; randomized here
        # to exercise the full compute path deterministically).
        "g_intra": 1.0 + 0.1 * jax.random.normal(ks[4], (N,), jnp.float32),
        "beta_intra": 0.1 * jax.random.normal(ks[5], (N,), jnp.float32),
        "g_inter": 1.0 + 0.1 * jax.random.normal(ks[6], (N,), jnp.float32),
        "beta_inter": 0.1 * jax.random.normal(ks[7], (N,), jnp.float32),
    }


if __name__ == "__main__":
    key = jax.random.PRNGKey(0)
    kx, kp = jax.random.split(key)

    B, N, K, S = 2, 32, 8, 16          # x: [B, N, K, S], PyTorch layout (L = K*S = 128)
    x = jax.random.normal(kx, (B, N, K, S), jnp.float32)
    params = prepare_params(_init_params(kp, N))   # fused param slab built once

    out = dual_computation_block(x, params)
    out = jax.block_until_ready(out)

    ref = _reference(x, params)
    assert out.shape == (B, N, K, S)
    assert jnp.allclose(out, ref, atol=2e-5, rtol=2e-5), "mismatch vs reference"

    print("KERNEL_OK")
</pallas_src>

<mosaic_0001>
module attributes {stable_mosaic.version = 11 : i64} {
  func.func @dcb_kernel(%arg0: i32, %arg1: i32, %arg2: memref<2x32x128xf32, #tpu.memory_space<vmem>>, %arg3: memref<32x32xf32, #tpu.memory_space<vmem>>, %arg4: memref<32x32xf32, #tpu.memory_space<vmem>>, %arg5: memref<32x8xf32, #tpu.memory_space<vmem>>, %arg6: memref<2x32x128xf32, #tpu.memory_space<vmem>>) attributes {dimension_semantics = [#tpu.dimension_semantics<parallel>, #tpu.dimension_semantics<parallel>], iteration_bounds = array<i64: 1, 1>, scalar_prefetch = 0 : i64, scratch_operands = 0 : i64, tpu.core_type = #tpu.core_type<tc>, window_params = [{transform_indices = @transform_0, window_bounds = array<i64: 2, 32, 128>}, {pipeline_mode = #tpu.pipeline_mode<synchronous>, transform_indices = @transform_1, window_bounds = array<i64: 32, 32>}, {pipeline_mode = #tpu.pipeline_mode<synchronous>, transform_indices = @transform_2, window_bounds = array<i64: 32, 32>}, {pipeline_mode = #tpu.pipeline_mode<synchronous>, transform_indices = @transform_3, window_bounds = array<i64: 32, 8>}, {transform_indices = @transform_4, window_bounds = array<i64: 2, 32, 128>}]} {
    %c0 = arith.constant 0 : index
    %c0_0 = arith.constant 0 : index
    %0 = vector.load %arg3[%c0, %c0_0] : memref<32x32xf32, #tpu.memory_space<vmem>>, vector<32x32xf32>
    %c0_1 = arith.constant 0 : index
    %c0_2 = arith.constant 0 : index
    %1 = vector.load %arg4[%c0_1, %c0_2] : memref<32x32xf32, #tpu.memory_space<vmem>>, vector<32x32xf32>
    %c0_3 = arith.constant 0 : index
    %c0_4 = arith.constant 0 : index
    %2 = vector.load %arg5[%c0_3, %c0_4] : memref<32x8xf32, #tpu.memory_space<vmem>>, vector<32x8xf32>
    %3 = vector.extract_strided_slice %2 {offsets = [0, 0], sizes = [32, 1], strides = [1, 1]} : vector<32x8xf32> to vector<32x1xf32>
    %4 = vector.extract_strided_slice %2 {offsets = [0, 1], sizes = [32, 1], strides = [1, 1]} : vector<32x8xf32> to vector<32x1xf32>
    %5 = vector.extract_strided_slice %2 {offsets = [0, 2], sizes = [32, 1], strides = [1, 1]} : vector<32x8xf32> to vector<32x1xf32>
    %6 = vector.extract_strided_slice %2 {offsets = [0, 3], sizes = [32, 1], strides = [1, 1]} : vector<32x8xf32> to vector<32x1xf32>
    %7 = vector.extract_strided_slice %2 {offsets = [0, 4], sizes = [32, 1], strides = [1, 1]} : vector<32x8xf32> to vector<32x1xf32>
    %8 = vector.extract_strided_slice %2 {offsets = [0, 5], sizes = [32, 1], strides = [1, 1]} : vector<32x8xf32> to vector<32x1xf32>
    %c0_5 = arith.constant 0 : index
    %c0_6 = arith.constant 0 : index
    %c0_7 = arith.constant 0 : index
    %9 = vector.load %arg2[%c0_5, %c0_6, %c0_7] : memref<2x32x128xf32, #tpu.memory_space<vmem>>, vector<1x32x128xf32>
    %10 = vector.shape_cast %9 : vector<1x32x128xf32> to vector<32x128xf32>
    %cst = arith.constant dense<0.000000e+00> : vector<32x128xf32>
    %11 = tpu.matmul %0, %10, %cst {dimension_numbers = #tpu.dot_dimension_numbers<[1], [0], [0], [1], [0, 0, 1, 1], [], []>} : vector<32x32xf32>, vector<32x128xf32>, vector<32x128xf32> -> vector<32x128xf32>
    %12 = vector.broadcast %3 : vector<32x1xf32> to vector<32x128xf32>
    %13 = arith.addf %11, %12 : vector<32x128xf32>
    %cst_8 = arith.constant dense<0.000000e+00> : vector<128xf32>
    %14 = vector.multi_reduction <add>, %13, %cst_8 [0] : vector<32x128xf32> to vector<128xf32>
    %15 = vector.shape_cast %14 : vector<128xf32> to vector<1x128xf32>
    %cst_9 = arith.constant 3.125000e-02 : f32
    %16 = vector.broadcast %cst_9 : f32 to vector<1x128xf32>
    %17 = arith.mulf %15, %16 : vector<1x128xf32>
    %18 = arith.mulf %13, %13 : vector<32x128xf32>
    %cst_10 = arith.constant dense<0.000000e+00> : vector<128xf32>
    %19 = vector.multi_reduction <add>, %18, %cst_10 [0] : vector<32x128xf32> to vector<128xf32>
    %20 = vector.shape_cast %19 : vector<128xf32> to vector<1x128xf32>
    %cst_11 = arith.constant 3.125000e-02 : f32
    %21 = vector.broadcast %cst_11 : f32 to vector<1x128xf32>
    %22 = arith.mulf %20, %21 : vector<1x128xf32>
    %23 = arith.mulf %17, %17 : vector<1x128xf32>
    %24 = arith.subf %22, %23 : vector<1x128xf32>
    %cst_12 = arith.constant 0.000000e+00 : f32
    %25 = vector.broadcast %cst_12 : f32 to vector<1x128xf32>
    %26 = arith.maximumf %24, %25 : vector<1x128xf32>
    %27 = vector.broadcast %17 : vector<1x128xf32> to vector<32x128xf32>
    %28 = arith.subf %13, %27 : vector<32x128xf32>
    %cst_13 = arith.constant 9.99999993E-9 : f32
    %29 = vector.broadcast %cst_13 : f32 to vector<1x128xf32>
    %30 = arith.addf %26, %29 : vector<1x128xf32>
    %31 = math.rsqrt %30 : vector<1x128xf32>
    %32 = vector.broadcast %31 : vector<1x128xf32> to vector<32x128xf32>
    %33 = arith.mulf %28, %32 : vector<32x128xf32>
    %34 = vector.broadcast %4 : vector<32x1xf32> to vector<32x128xf32>
    %35 = arith.mulf %33, %34 : vector<32x128xf32>
    %36 = vector.broadcast %5 : vector<32x1xf32> to vector<32x128xf32>
    %37 = arith.addf %35, %36 : vector<32x128xf32>
    %38 = arith.addf %37, %10 : vector<32x128xf32>
    %cst_14 = arith.constant dense<0.000000e+00> : vector<32x128xf32>
    %39 = tpu.matmul %1, %38, %cst_14 {dimension_numbers = #tpu.dot_dimension_numbers<[1], [0], [0], [1], [0, 0, 1, 1], [], []>} : vector<32x32xf32>, vector<32x128xf32>, vector<32x128xf32> -> vector<32x128xf32>
    %40 = vector.broadcast %6 : vector<32x1xf32> to vector<32x128xf32>
    %41 = arith.addf %39, %40 : vector<32x128xf32>
    %cst_15 = arith.constant dense<0.000000e+00> : vector<128xf32>
    %42 = vector.multi_reduction <add>, %41, %cst_15 [0] : vector<32x128xf32> to vector<128xf32>
    %43 = vector.shape_cast %42 : vector<128xf32> to vector<1x128xf32>
    %cst_16 = arith.constant 3.125000e-02 : f32
    %44 = vector.broadcast %cst_16 : f32 to vector<1x128xf32>
    %45 = arith.mulf %43, %44 : vector<1x128xf32>
    %46 = arith.mulf %41, %41 : vector<32x128xf32>
    %cst_17 = arith.constant dense<0.000000e+00> : vector<128xf32>
    %47 = vector.multi_reduction <add>, %46, %cst_17 [0] : vector<32x128xf32> to vector<128xf32>
    %48 = vector.shape_cast %47 : vector<128xf32> to vector<1x128xf32>
    %cst_18 = arith.constant 3.125000e-02 : f32
    %49 = vector.broadcast %cst_18 : f32 to vector<1x128xf32>
    %50 = arith.mulf %48, %49 : vector<1x128xf32>
    %51 = arith.mulf %45, %45 : vector<1x128xf32>
    %52 = arith.subf %50, %51 : vector<1x128xf32>
    %cst_19 = arith.constant 0.000000e+00 : f32
    %53 = vector.broadcast %cst_19 : f32 to vector<1x128xf32>
    %54 = arith.maximumf %52, %53 : vector<1x128xf32>
    %55 = vector.broadcast %45 : vector<1x128xf32> to vector<32x128xf32>
    %56 = arith.subf %41, %55 : vector<32x128xf32>
    %cst_20 = arith.constant 9.99999993E-9 : f32
    %57 = vector.broadcast %cst_20 : f32 to vector<1x128xf32>
    %58 = arith.addf %54, %57 : vector<1x128xf32>
    %59 = math.rsqrt %58 : vector<1x128xf32>
    %60 = vector.broadcast %59 : vector<1x128xf32> to vector<32x128xf32>
    %61 = arith.mulf %56, %60 : vector<32x128xf32>
    %62 = vector.broadcast %7 : vector<32x1xf32> to vector<32x128xf32>
    %63 = arith.mulf %61, %62 : vector<32x128xf32>
    %64 = vector.broadcast %8 : vector<32x1xf32> to vector<32x128xf32>
    %65 = arith.addf %63, %64 : vector<32x128xf32>
    %66 = arith.addf %65, %10 : vector<32x128xf32>
    %c0_21 = arith.constant 0 : index
    %c0_22 = arith.constant 0 : index
    %c0_23 = arith.constant 0 : index
    %67 = vector.load %arg6[%c0_21, %c0_22, %c0_23] : memref<2x32x128xf32, #tpu.memory_space<vmem>>, vector<1x32x128xf32>
    %68 = vector.shape_cast %67 : vector<1x32x128xf32> to vector<32x128xf32>
    %69 = vector.shape_cast %66 : vector<32x128xf32> to vector<1x32x128xf32>
    tpu.vector_store %arg6[%c0_21, %c0_22, %c0_23], %69 {strides = array<i32>} : memref<2x32x128xf32, #tpu.memory_space<vmem>>, vector<1x32x128xf32>,
    %c1 = arith.constant 1 : index
    %c0_24 = arith.constant 0 : index
    %c0_25 = arith.constant 0 : index
    %70 = vector.load %arg2[%c1, %c0_24, %c0_25] : memref<2x32x128xf32, #tpu.memory_space<vmem>>, vector<1x32x128xf32>
    %71 = vector.shape_cast %70 : vector<1x32x128xf32> to vector<32x128xf32>
    %cst_26 = arith.constant dense<0.000000e+00> : vector<32x128xf32>
    %72 = tpu.matmul %0, %71, %cst_26 {dimension_numbers = #tpu.dot_dimension_numbers<[1], [0], [0], [1], [0, 0, 1, 1], [], []>} : vector<32x32xf32>, vector<32x128xf32>, vector<32x128xf32> -> vector<32x128xf32>
    %73 = vector.broadcast %3 : vector<32x1xf32> to vector<32x128xf32>
    %74 = arith.addf %72, %73 : vector<32x128xf32>
    %cst_27 = arith.constant dense<0.000000e+00> : vector<128xf32>
    %75 = vector.multi_reduction <add>, %74, %cst_27 [0] : vector<32x128xf32> to vector<128xf32>
    %76 = vector.shape_cast %75 : vector<128xf32> to vector<1x128xf32>
    %cst_28 = arith.constant 3.125000e-02 : f32
    %77 = vector.broadcast %cst_28 : f32 to vector<1x128xf32>
    %78 = arith.mulf %76, %77 : vector<1x128xf32>
    %79 = arith.mulf %74, %74 : vector<32x128xf32>
    %cst_29 = arith.constant dense<0.000000e+00> : vector<128xf32>
    %80 = vector.multi_reduction <add>, %79, %cst_29 [0] : vector<32x128xf32> to vector<128xf32>
    %81 = vector.shape_cast %80 : vector<128xf32> to vector<1x128xf32>
    %cst_30 = arith.constant 3.125000e-02 : f32
    %82 = vector.broadcast %cst_30 : f32 to vector<1x128xf32>
    %83 = arith.mulf %81, %82 : vector<1x128xf32>
    %84 = arith.mulf %78, %78 : vector<1x128xf32>
    %85 = arith.subf %83, %84 : vector<1x128xf32>
    %cst_31 = arith.constant 0.000000e+00 : f32
    %86 = vector.broadcast %cst_31 : f32 to vector<1x128xf32>
    %87 = arith.maximumf %85, %86 : vector<1x128xf32>
    %88 = vector.broadcast %78 : vector<1x128xf32> to vector<32x128xf32>
    %89 = arith.subf %74, %88 : vector<32x128xf32>
    %cst_32 = arith.constant 9.99999993E-9 : f32
    %90 = vector.broadcast %cst_32 : f32 to vector<1x128xf32>
    %91 = arith.addf %87, %90 : vector<1x128xf32>
    %92 = math.rsqrt %91 : vector<1x128xf32>
    %93 = vector.broadcast %92 : vector<1x128xf32> to vector<32x128xf32>
    %94 = arith.mulf %89, %93 : vector<32x128xf32>
    %95 = vector.broadcast %4 : vector<32x1xf32> to vector<32x128xf32>
    %96 = arith.mulf %94, %95 : vector<32x128xf32>
    %97 = vector.broadcast %5 : vector<32x1xf32> to vector<32x128xf32>
    %98 = arith.addf %96, %97 : vector<32x128xf32>
    %99 = arith.addf %98, %71 : vector<32x128xf32>
    %cst_33 = arith.constant dense<0.000000e+00> : vector<32x128xf32>
    %100 = tpu.matmul %1, %99, %cst_33 {dimension_numbers = #tpu.dot_dimension_numbers<[1], [0], [0], [1], [0, 0, 1, 1], [], []>} : vector<32x32xf32>, vector<32x128xf32>, vector<32x128xf32> -> vector<32x128xf32>
    %101 = vector.broadcast %6 : vector<32x1xf32> to vector<32x128xf32>
    %102 = arith.addf %100, %101 : vector<32x128xf32>
    %cst_34 = arith.constant dense<0.000000e+00> : vector<128xf32>
    %103 = vector.multi_reduction <add>, %102, %cst_34 [0] : vector<32x128xf32> to vector<128xf32>
    %104 = vector.shape_cast %103 : vector<128xf32> to vector<1x128xf32>
    %cst_35 = arith.constant 3.125000e-02 : f32
    %105 = vector.broadcast %cst_35 : f32 to vector<1x128xf32>
    %106 = arith.mulf %104, %105 : vector<1x128xf32>
    %107 = arith.mulf %102, %102 : vector<32x128xf32>
    %cst_36 = arith.constant dense<0.000000e+00> : vector<128xf32>
    %108 = vector.multi_reduction <add>, %107, %cst_36 [0] : vector<32x128xf32> to vector<128xf32>
    %109 = vector.shape_cast %108 : vector<128xf32> to vector<1x128xf32>
    %cst_37 = arith.constant 3.125000e-02 : f32
    %110 = vector.broadcast %cst_37 : f32 to vector<1x128xf32>
    %111 = arith.mulf %109, %110 : vector<1x128xf32>
    %112 = arith.mulf %106, %106 : vector<1x128xf32>
    %113 = arith.subf %111, %112 : vector<1x128xf32>
    %cst_38 = arith.constant 0.000000e+00 : f32
    %114 = vector.broadcast %cst_38 : f32 to vector<1x128xf32>
    %115 = arith.maximumf %113, %114 : vector<1x128xf32>
    %116 = vector.broadcast %106 : vector<1x128xf32> to vector<32x128xf32>
    %117 = arith.subf %102, %116 : vector<32x128xf32>
    %cst_39 = arith.constant 9.99999993E-9 : f32
    %118 = vector.broadcast %cst_39 : f32 to vector<1x128xf32>
    %119 = arith.addf %115, %118 : vector<1x128xf32>
    %120 = math.rsqrt %119 : vector<1x128xf32>
    %121 = vector.broadcast %120 : vector<1x128xf32> to vector<32x128xf32>
    %122 = arith.mulf %117, %121 : vector<32x128xf32>
    %123 = vector.broadcast %7 : vector<32x1xf32> to vector<32x128xf32>
    %124 = arith.mulf %122, %123 : vector<32x128xf32>
    %125 = vector.broadcast %8 : vector<32x1xf32> to vector<32x128xf32>
    %126 = arith.addf %124, %125 : vector<32x128xf32>
    %127 = arith.addf %126, %71 : vector<32x128xf32>
    %c1_40 = arith.constant 1 : index
    %c0_41 = arith.constant 0 : index
    %c0_42 = arith.constant 0 : index
    %128 = vector.load %arg6[%c1_40, %c0_41, %c0_42] : memref<2x32x128xf32, #tpu.memory_space<vmem>>, vector<1x32x128xf32>
    %129 = vector.shape_cast %128 : vector<1x32x128xf32> to vector<32x128xf32>
    %130 = vector.shape_cast %127 : vector<32x128xf32> to vector<1x32x128xf32>
    tpu.vector_store %arg6[%c1_40, %c0_41, %c0_42], %130 {strides = array<i32>} : memref<2x32x128xf32, #tpu.memory_space<vmem>>, vector<1x32x128xf32>,
    return
  }
  func.func @transform_0(%arg0: i32, %arg1: i32) -> (i32, i32, i32) {
    %c0_i32 = arith.constant 0 : i32
    %c0_i32_0 = arith.constant 0 : i32
    return %arg0, %c0_i32, %arg1 : i32, i32, i32
  }
  func.func @transform_1(%arg0: i32, %arg1: i32) -> (i32, i32) {
    %c0_i32 = arith.constant 0 : i32
    %c0_i32_0 = arith.constant 0 : i32
    %c0_i32_1 = arith.constant 0 : i32
    return %c0_i32, %c0_i32_0 : i32, i32
  }
  func.func @transform_2(%arg0: i32, %arg1: i32) -> (i32, i32) {
    %c0_i32 = arith.constant 0 : i32
    %c0_i32_0 = arith.constant 0 : i32
    %c0_i32_1 = arith.constant 0 : i32
    return %c0_i32, %c0_i32_0 : i32, i32
  }
  func.func @transform_3(%arg0: i32, %arg1: i32) -> (i32, i32) {
    %c0_i32 = arith.constant 0 : i32
    %c0_i32_0 = arith.constant 0 : i32
    %c0_i32_1 = arith.constant 0 : i32
    return %c0_i32, %c0_i32_0 : i32, i32
  }
  func.func @transform_4(%arg0: i32, %arg1: i32) -> (i32, i32, i32) {
    %c0_i32 = arith.constant 0 : i32
    %c0_i32_0 = arith.constant 0 : i32
    return %arg0, %c0_i32, %arg1 : i32, i32, i32
  }
}

module attributes {stable_mosaic.version = 11 : i64} {
  func.func @dcb_kernel(%arg0: i32, %arg1: i32, %arg2: memref<2x32x128xf32, #tpu.memory_space<vmem>>, %arg3: memref<32x32xf32, #tpu.memory_space<vmem>>, %arg4: memref<32x32xf32, #tpu.memory_space<vmem>>, %arg5: memref<32x8xf32, #tpu.memory_space<vmem>>, %arg6: memref<2x32x128xf32, #tpu.memory_space<vmem>>) attributes {dimension_semantics = [#tpu.dimension_semantics<parallel>, #tpu.dimension_semantics<parallel>], iteration_bounds = array<i64: 1, 1>, scalar_prefetch = 0 : i64, scratch_operands = 0 : i64, tpu.core_type = #tpu.core_type<tc>, window_params = [{transform_indices = @transform_0, window_bounds = array<i64: 2, 32, 128>}, {pipeline_mode = #tpu.pipeline_mode<synchronous>, transform_indices = @transform_1, window_bounds = array<i64: 32, 32>}, {pipeline_mode = #tpu.pipeline_mode<synchronous>, transform_indices = @transform_2, window_bounds = array<i64: 32, 32>}, {pipeline_mode = #tpu.pipeline_mode<synchronous>, transform_indices = @transform_3, window_bounds = array<i64: 32, 8>}, {transform_indices = @transform_4, window_bounds = array<i64: 2, 32, 128>}]} {
    %c0 = arith.constant 0 : index
    %c0_0 = arith.constant 0 : index
    %0 = vector.load %arg3[%c0, %c0_0] : memref<32x32xf32, #tpu.memory_space<vmem>>, vector<32x32xf32>
    %c0_1 = arith.constant 0 : index
    %c0_2 = arith.constant 0 : index
    %1 = vector.load %arg4[%c0_1, %c0_2] : memref<32x32xf32, #tpu.memory_space<vmem>>, vector<32x32xf32>
    %c0_3 = arith.constant 0 : index
    %c0_4 = arith.constant 0 : index
    %2 = vector.load %arg5[%c0_3, %c0_4] : memref<32x8xf32, #tpu.memory_space<vmem>>, vector<32x8xf32>
    %3 = vector.extract_strided_slice %2 {offsets = [0, 0], sizes = [32, 1], strides = [1, 1]} : vector<32x8xf32> to vector<32x1xf32>
    %4 = vector.extract_strided_slice %2 {offsets = [0, 1], sizes = [32, 1], strides = [1, 1]} : vector<32x8xf32> to vector<32x1xf32>
    %5 = vector.extract_strided_slice %2 {offsets = [0, 2], sizes = [32, 1], strides = [1, 1]} : vector<32x8xf32> to vector<32x1xf32>
    %6 = vector.extract_strided_slice %2 {offsets = [0, 3], sizes = [32, 1], strides = [1, 1]} : vector<32x8xf32> to vector<32x1xf32>
    %7 = vector.extract_strided_slice %2 {offsets = [0, 4], sizes = [32, 1], strides = [1, 1]} : vector<32x8xf32> to vector<32x1xf32>
    %8 = vector.extract_strided_slice %2 {offsets = [0, 5], sizes = [32, 1], strides = [1, 1]} : vector<32x8xf32> to vector<32x1xf32>
    %c0_5 = arith.constant 0 : index
    %c0_6 = arith.constant 0 : index
    %c0_7 = arith.constant 0 : index
    %9 = vector.load %arg2[%c0_5, %c0_6, %c0_7] : memref<2x32x128xf32, #tpu.memory_space<vmem>>, vector<1x32x128xf32>
    %10 = vector.shape_cast %9 : vector<1x32x128xf32> to vector<32x128xf32>
    %cst = arith.constant dense<0.000000e+00> : vector<32x128xf32>
    %11 = tpu.matmul %0, %10, %cst {dimension_numbers = #tpu.dot_dimension_numbers<[1], [0], [0], [1], [0, 0, 1, 1], [], []>} : vector<32x32xf32>, vector<32x128xf32>, vector<32x128xf32> -> vector<32x128xf32>
    %12 = vector.broadcast %3 : vector<32x1xf32> to vector<32x128xf32>
    %13 = arith.addf %11, %12 : vector<32x128xf32>
    %cst_8 = arith.constant dense<0.000000e+00> : vector<128xf32>
    %14 = vector.multi_reduction <add>, %13, %cst_8 [0] : vector<32x128xf32> to vector<128xf32>
    %15 = vector.shape_cast %14 : vector<128xf32> to vector<1x128xf32>
    %cst_9 = arith.constant 3.125000e-02 : f32
    %16 = vector.broadcast %cst_9 : f32 to vector<1x128xf32>
    %17 = arith.mulf %15, %16 : vector<1x128xf32>
    %18 = arith.mulf %13, %13 : vector<32x128xf32>
    %cst_10 = arith.constant dense<0.000000e+00> : vector<128xf32>
    %19 = vector.multi_reduction <add>, %18, %cst_10 [0] : vector<32x128xf32> to vector<128xf32>
    %20 = vector.shape_cast %19 : vector<128xf32> to vector<1x128xf32>
    %cst_11 = arith.constant 3.125000e-02 : f32
    %21 = vector.broadcast %cst_11 : f32 to vector<1x128xf32>
    %22 = arith.mulf %20, %21 : vector<1x128xf32>
    %23 = arith.mulf %17, %17 : vector<1x128xf32>
    %24 = arith.subf %22, %23 : vector<1x128xf32>
    %cst_12 = arith.constant 0.000000e+00 : f32
    %25 = vector.broadcast %cst_12 : f32 to vector<1x128xf32>
    %26 = arith.maximumf %24, %25 : vector<1x128xf32>
    %27 = vector.broadcast %17 : vector<1x128xf32> to vector<32x128xf32>
    %28 = arith.subf %13, %27 : vector<32x128xf32>
    %cst_13 = arith.constant 9.99999993E-9 : f32
    %29 = vector.broadcast %cst_13 : f32 to vector<1x128xf32>
    %30 = arith.addf %26, %29 : vector<1x128xf32>
    %31 = math.rsqrt %30 : vector<1x128xf32>
    %32 = vector.broadcast %31 : vector<1x128xf32> to vector<32x128xf32>
    %33 = arith.mulf %28, %32 : vector<32x128xf32>
    %34 = vector.broadcast %4 : vector<32x1xf32> to vector<32x128xf32>
    %35 = arith.mulf %33, %34 : vector<32x128xf32>
    %36 = vector.broadcast %5 : vector<32x1xf32> to vector<32x128xf32>
    %37 = arith.addf %35, %36 : vector<32x128xf32>
    %38 = arith.addf %37, %10 : vector<32x128xf32>
    %cst_14 = arith.constant dense<0.000000e+00> : vector<32x128xf32>
    %39 = tpu.matmul %1, %38, %cst_14 {dimension_numbers = #tpu.dot_dimension_numbers<[1], [0], [0], [1], [0, 0, 1, 1], [], []>} : vector<32x32xf32>, vector<32x128xf32>, vector<32x128xf32> -> vector<32x128xf32>
    %40 = vector.broadcast %6 : vector<32x1xf32> to vector<32x128xf32>
    %41 = arith.addf %39, %40 : vector<32x128xf32>
    %cst_15 = arith.constant dense<0.000000e+00> : vector<128xf32>
    %42 = vector.multi_reduction <add>, %41, %cst_15 [0] : vector<32x128xf32> to vector<128xf32>
    %43 = vector.shape_cast %42 : vector<128xf32> to vector<1x128xf32>
    %cst_16 = arith.constant 3.125000e-02 : f32
    %44 = vector.broadcast %cst_16 : f32 to vector<1x128xf32>
    %45 = arith.mulf %43, %44 : vector<1x128xf32>
    %46 = arith.mulf %41, %41 : vector<32x128xf32>
    %cst_17 = arith.constant dense<0.000000e+00> : vector<128xf32>
    %47 = vector.multi_reduction <add>, %46, %cst_17 [0] : vector<32x128xf32> to vector<128xf32>
    %48 = vector.shape_cast %47 : vector<128xf32> to vector<1x128xf32>
    %cst_18 = arith.constant 3.125000e-02 : f32
    %49 = vector.broadcast %cst_18 : f32 to vector<1x128xf32>
    %50 = arith.mulf %48, %49 : vector<1x128xf32>
    %51 = arith.mulf %45, %45 : vector<1x128xf32>
    %52 = arith.subf %50, %51 : vector<1x128xf32>
    %cst_19 = arith.constant 0.000000e+00 : f32
    %53 = vector.broadcast %cst_19 : f32 to vector<1x128xf32>
    %54 = arith.maximumf %52, %53 : vector<1x128xf32>
    %55 = vector.broadcast %45 : vector<1x128xf32> to vector<32x128xf32>
    %56 = arith.subf %41, %55 : vector<32x128xf32>
    %cst_20 = arith.constant 9.99999993E-9 : f32
    %57 = vector.broadcast %cst_20 : f32 to vector<1x128xf32>
    %58 = arith.addf %54, %57 : vector<1x128xf32>
    %59 = math.rsqrt %58 : vector<1x128xf32>
    %60 = vector.broadcast %59 : vector<1x128xf32> to vector<32x128xf32>
    %61 = arith.mulf %56, %60 : vector<32x128xf32>
    %62 = vector.broadcast %7 : vector<32x1xf32> to vector<32x128xf32>
    %63 = arith.mulf %61, %62 : vector<32x128xf32>
    %64 = vector.broadcast %8 : vector<32x1xf32> to vector<32x128xf32>
    %65 = arith.addf %63, %64 : vector<32x128xf32>
    %66 = arith.addf %65, %10 : vector<32x128xf32>
    %c0_21 = arith.constant 0 : index
    %c0_22 = arith.constant 0 : index
    %c0_23 = arith.constant 0 : index
    %67 = vector.load %arg6[%c0_21, %c0_22, %c0_23] : memref<2x32x128xf32, #tpu.memory_space<vmem>>, vector<1x32x128xf32>
    %68 = vector.shape_cast %67 : vector<1x32x128xf32> to vector<32x128xf32>
    %69 = vector.shape_cast %66 : vector<32x128xf32> to vector<1x32x128xf32>
    tpu.vector_store %arg6[%c0_21, %c0_22, %c0_23], %69 {strides = array<i32>} : memref<2x32x128xf32, #tpu.memory_space<vmem>>, vector<1x32x128xf32>,
    %c1 = arith.constant 1 : index
    %c0_24 = arith.constant 0 : index
    %c0_25 = arith.constant 0 : index
    %70 = vector.load %arg2[%c1, %c0_24, %c0_25] : memref<2x32x128xf32, #tpu.memory_space<vmem>>, vector<1x32x128xf32>
    %71 = vector.shape_cast %70 : vector<1x32x128xf32> to vector<32x128xf32>
    %cst_26 = arith.constant dense<0.000000e+00> : vector<32x128xf32>
    %72 = tpu.matmul %0, %71, %cst_26 {dimension_numbers = #tpu.dot_dimension_numbers<[1], [0], [0], [1], [0, 0, 1, 1], [], []>} : vector<32x32xf32>, vector<32x128xf32>, vector<32x128xf32> -> vector<32x128xf32>
    %73 = vector.broadcast %3 : vector<32x1xf32> to vector<32x128xf32>
    %74 = arith.addf %72, %73 : vector<32x128xf32>
    %cst_27 = arith.constant dense<0.000000e+00> : vector<128xf32>
    %75 = vector.multi_reduction <add>, %74, %cst_27 [0] : vector<32x128xf32> to vector<128xf32>
    %76 = vector.shape_cast %75 : vector<128xf32> to vector<1x128xf32>
    %cst_28 = arith.constant 3.125000e-02 : f32
    %77 = vector.broadcast %cst_28 : f32 to vector<1x128xf32>
    %78 = arith.mulf %76, %77 : vector<1x128xf32>
    %79 = arith.mulf %74, %74 : vector<32x128xf32>
    %cst_29 = arith.constant dense<0.000000e+00> : vector<128xf32>
    %80 = vector.multi_reduction <add>, %79, %cst_29 [0] : vector<32x128xf32> to vector<128xf32>
    %81 = vector.shape_cast %80 : vector<128xf32> to vector<1x128xf32>
    %cst_30 = arith.constant 3.125000e-02 : f32
    %82 = vector.broadcast %cst_30 : f32 to vector<1x128xf32>
    %83 = arith.mulf %81, %82 : vector<1x128xf32>
    %84 = arith.mulf %78, %78 : vector<1x128xf32>
    %85 = arith.subf %83, %84 : vector<1x128xf32>
    %cst_31 = arith.constant 0.000000e+00 : f32
    %86 = vector.broadcast %cst_31 : f32 to vector<1x128xf32>
    %87 = arith.maximumf %85, %86 : vector<1x128xf32>
    %88 = vector.broadcast %78 : vector<1x128xf32> to vector<32x128xf32>
    %89 = arith.subf %74, %88 : vector<32x128xf32>
    %cst_32 = arith.constant 9.99999993E-9 : f32
    %90 = vector.broadcast %cst_32 : f32 to vector<1x128xf32>
    %91 = arith.addf %87, %90 : vector<1x128xf32>
    %92 = math.rsqrt %91 : vector<1x128xf32>
    %93 = vector.broadcast %92 : vector<1x128xf32> to vector<32x128xf32>
    %94 = arith.mulf %89, %93 : vector<32x128xf32>
    %95 = vector.broadcast %4 : vector<32x1xf32> to vector<32x128xf32>
    %96 = arith.mulf %94, %95 : vector<32x128xf32>
    %97 = vector.broadcast %5 : vector<32x1xf32> to vector<32x128xf32>
    %98 = arith.addf %96, %97 : vector<32x128xf32>
    %99 = arith.addf %98, %71 : vector<32x128xf32>
    %cst_33 = arith.constant dense<0.000000e+00> : vector<32x128xf32>
    %100 = tpu.matmul %1, %99, %cst_33 {dimension_numbers = #tpu.dot_dimension_numbers<[1], [0], [0], [1], [0, 0, 1, 1], [], []>} : vector<32x32xf32>, vector<32x128xf32>, vector<32x128xf32> -> vector<32x128xf32>
    %101 = vector.broadcast %6 : vector<32x1xf32> to vector<32x128xf32>
    %102 = arith.addf %100, %101 : vector<32x128xf32>
    %cst_34 = arith.constant dense<0.000000e+00> : vector<128xf32>
    %103 = vector.multi_reduction <add>, %102, %cst_34 [0] : vector<32x128xf32> to vector<128xf32>
    %104 = vector.shape_cast %103 : vector<128xf32> to vector<1x128xf32>
    %cst_35 = arith.constant 3.125000e-02 : f32
    %105 = vector.broadcast %cst_35 : f32 to vector<1x128xf32>
    %106 = arith.mulf %104, %105 : vector<1x128xf32>
    %107 = arith.mulf %102, %102 : vector<32x128xf32>
    %cst_36 = arith.constant dense<0.000000e+00> : vector<128xf32>
    %108 = vector.multi_reduction <add>, %107, %cst_36 [0] : vector<32x128xf32> to vector<128xf32>
    %109 = vector.shape_cast %108 : vector<128xf32> to vector<1x128xf32>
    %cst_37 = arith.constant 3.125000e-02 : f32
    %110 = vector.broadcast %cst_37 : f32 to vector<1x128xf32>
    %111 = arith.mulf %109, %110 : vector<1x128xf32>
    %112 = arith.mulf %106, %106 : vector<1x128xf32>
    %113 = arith.subf %111, %112 : vector<1x128xf32>
    %cst_38 = arith.constant 0.000000e+00 : f32
    %114 = vector.broadcast %cst_38 : f32 to vector<1x128xf32>
    %115 = arith.maximumf %113, %114 : vector<1x128xf32>
    %116 = vector.broadcast %106 : vector<1x128xf32> to vector<32x128xf32>
    %117 = arith.subf %102, %116 : vector<32x128xf32>
    %cst_39 = arith.constant 9.99999993E-9 : f32
    %118 = vector.broadcast %cst_39 : f32 to vector<1x128xf32>
    %119 = arith.addf %115, %118 : vector<1x128xf32>
    %120 = math.rsqrt %119 : vector<1x128xf32>
    %121 = vector.broadcast %120 : vector<1x128xf32> to vector<32x128xf32>
    %122 = arith.mulf %117, %121 : vector<32x128xf32>
    %123 = vector.broadcast %7 : vector<32x1xf32> to vector<32x128xf32>
    %124 = arith.mulf %122, %123 : vector<32x128xf32>
    %125 = vector.broadcast %8 : vector<32x1xf32> to vector<32x128xf32>
    %126 = arith.addf %124, %125 : vector<32x128xf32>
    %127 = arith.addf %126, %71 : vector<32x128xf32>
    %c1_40 = arith.constant 1 : index
    %c0_41 = arith.constant 0 : index
    %c0_42 = arith.constant 0 : index
    %128 = vector.load %arg6[%c1_40, %c0_41, %c0_42] : memref<2x32x128xf32, #tpu.memory_space<vmem>>, vector<1x32x128xf32>
    %129 = vector.shape_cast %128 : vector<1x32x128xf32> to vector<32x128xf32>
    %130 = vector.shape_cast %127 : vector<32x128xf32> to vector<1x32x128xf32>
    tpu.vector_store %arg6[%c1_40, %c0_41, %c0_42], %130 {strides = array<i32>} : memref<2x32x128xf32, #tpu.memory_space<vmem>>, vector<1x32x128xf32>,
    return
  }
  func.func @transform_0(%arg0: i32, %arg1: i32) -> (i32, i32, i32) {
    %c0_i32 = arith.constant 0 : i32
    %c0_i32_0 = arith.constant 0 : i32
    return %arg0, %c0_i32, %arg1 : i32, i32, i32
  }
  func.func @transform_1(%arg0: i32, %arg1: i32) -> (i32, i32) {
    %c0_i32 = arith.constant 0 : i32
    %c0_i32_0 = arith.constant 0 : i32
    %c0_i32_1 = arith.constant 0 : i32
    return %c0_i32, %c0_i32_0 : i32, i32
  }
  func.func @transform_2(%arg0: i32, %arg1: i32) -> (i32, i32) {
    %c0_i32 = arith.constant 0 : i32
    %c0_i32_0 = arith.constant 0 : i32
    %c0_i32_1 = arith.constant 0 : i32
    return %c0_i32, %c0_i32_0 : i32, i32
  }
  func.func @transform_3(%arg0: i32, %arg1: i32) -> (i32, i32) {
    %c0_i32 = arith.constant 0 : i32
    %c0_i32_0 = arith.constant 0 : i32
    %c0_i32_1 = arith.constant 0 : i32
    return %c0_i32, %c0_i32_0 : i32, i32
  }
  func.func @transform_4(%arg0: i32, %arg1: i32) -> (i32, i32, i32) {
    %c0_i32 = arith.constant 0 : i32
    %c0_i32_0 = arith.constant 0 : i32
    return %arg0, %c0_i32, %arg1 : i32, i32, i32
  }
}

</mosaic_0001>

<llo_original>
// kernel: tpu_custom_call.1
$region0: #{tpu_custom_call.1}
  #allocation0 [shape = 'u32[]', space=smem, size = 0x4, offset = 0x4, fixed_abs, tag = 'smem constant byte address 0x4 - core index']
  #allocation1 [shape = 'u32[72,128]{1,0:T(1,128)}', space=vmem, size = 0x9000, scoped, tag = 'internal scratch']
  %s0 = inlined_call_operand.hbm [shape: f32[2,32,128], index: 0, kind: input, shape index: {}]
  %s1 = inlined_call_operand.vmem [shape: f32[32,32], index: 1, kind: input, shape index: {}]
  %s2 = inlined_call_operand.hbm [shape: f32[32,32], index: 2, kind: input, shape index: {}]
  %s3 = inlined_call_operand.vmem [shape: f32[32,8], index: 3, kind: input, shape index: {}]
  %s4 = inlined_call_operand.hbm [shape: f32[2,32,128], index: 4, kind: output, shape index: {}]
  %s5 = sld [smem:[#allocation0]]
  $region34: #{tpu_custom_call.1} parent=0
    _
  %s7 = ssub.s32 1, %s5
  %s8 = scalar_select 0, %s7, %s5
  $region1: #{tpu_custom_call.1} parent=0
    #allocation2 [shape = 'u8[32768]{0}', space=vmem, size = 0x8000, scoped, tag = 'input window, operand 0, single buffered']
    #allocation3 [shape = 's32[1]{0}', space=sflag, size = 0x4, scoped, tag = 'scoped memory for tpu_custom_call.1']
    #allocation4 [shape = 's32[1]{0}', space=sflag, size = 0x4, scoped, tag = 'scoped memory for tpu_custom_call.1']
    #allocation5 [shape = 'u8[16384]{0}', space=vmem, size = 0x4000, scoped, tag = 'input window, operand 2, single buffered']
    #allocation6 [shape = 's32[1]{0}', space=sflag, size = 0x4, scoped, tag = 'scoped memory for tpu_custom_call.1']
    #allocation7 [shape = 'u8[32768]{0}', space=vmem, size = 0x8000, scoped, tag = 'output window, operand 0, single buffered']
    %9 = vsyncpa [#allocation3], 0
    %10 = vsyncpa [#allocation6], 0
    %11 = vsyncpa [#allocation4], 0
    // Predicated region
    $region2: #{tpu_custom_call.1} parent=1 // pred_check
      _
    $region3: #{tpu_custom_call.1} parent=1 // pred_check_branch
      %13 = sbr.rel (0) target = $region5
    $region4: #{tpu_custom_call.1} parent=1 // pred_region
      %15 = vsyncadd [#allocation3], 0
      %s16 = sshll.u32 %s0, 4
      %s17 = int_to_ptr.hbm [resolvable:$true] %s16
      %s18 = sshll.u32 [#allocation2], 4
      %s19 = int_to_ptr.vmem [resolvable:$true] %s18
      %24 = dma.hbm_to_vmem [thread:$0]  %s17, 1024, %s19, [#allocation3], 128, 128, 8
    $region5: #{tpu_custom_call.1} parent=1 // pred_fallthru
      _
    // Predicated region
    $region6: #{tpu_custom_call.1} parent=1 // pred_check
      _
    $region7: #{tpu_custom_call.1} parent=1 // pred_check_branch
      %26 = sbr.rel (0) target = $region9
    $region8: #{tpu_custom_call.1} parent=1 // pred_region
      _
    $region9: #{tpu_custom_call.1} parent=1 // pred_fallthru
      _
    // Predicated region
    $region10: #{tpu_custom_call.1} parent=1 // pred_check
      _
    $region11: #{tpu_custom_call.1} parent=1 // pred_check_branch
      %28 = sbr.rel (0) target = $region13
    $region12: #{tpu_custom_call.1} parent=1 // pred_region
      %30 = vsyncadd [#allocation6], 0
      %s31 = sshll.u32 %s2, 4
      %s32 = int_to_ptr.hbm [resolvable:$true] %s31
      %s33 = sshll.u32 [#allocation5], 4
      %s34 = int_to_ptr.vmem [resolvable:$true] %s33
      %39 = dma.hbm_to_vmem [thread:$0]  %s32, 512, %s34, [#allocation6], 128, 128, 8
    $region13: #{tpu_custom_call.1} parent=1 // pred_fallthru
      _
    // Predicated region
    $region14: #{tpu_custom_call.1} parent=1 // pred_check
      _
    $region15: #{tpu_custom_call.1} parent=1 // pred_check_branch
      %41 = sbr.rel (0) target = $region17
    $region16: #{tpu_custom_call.1} parent=1 // pred_region
      _
    $region17: #{tpu_custom_call.1} parent=1 // pred_fallthru
      _
    // Predicated region
    $region18: #{tpu_custom_call.1} parent=1 // pred_check
      _
    $region19: #{tpu_custom_call.1} parent=1 // pred_check_branch
      %43 = sbr.rel (0) target = $region21
    $region20: #{tpu_custom_call.1} parent=1 // pred_region
      %45 = dma.done [#allocation3], 1024
    $region21: #{tpu_custom_call.1} parent=1 // pred_fallthru
      _
    // Predicated region
    $region22: #{tpu_custom_call.1} parent=1 // pred_check
      _
    $region23: #{tpu_custom_call.1} parent=1 // pred_check_branch
      %47 = sbr.rel (0) target = $region25
    $region24: #{tpu_custom_call.1} parent=1 // pred_region
      %49 = dma.done [#allocation6], 512
    $region25: #{tpu_custom_call.1} parent=1 // pred_fallthru
      _
    %v50 = vld [vmem:[%s1] sm:$0xff]
    %v51 = vld [vmem:[%s1 + $0x8] sm:$0xff]
    %v52 = vld [vmem:[%s1 + $0x10] sm:$0xff]
    %v53 = vld [vmem:[%s1 + $0x18] sm:$0xff]
    %v54 = vld [vmem:[#allocation5] sm:$0xff]
    %v55 = vld [vmem:[#allocation5 + $0x8] sm:$0xff]
    %v56 = vld [vmem:[#allocation5 + $0x10] sm:$0xff]
    %v57 = vld [vmem:[#allocation5 + $0x18] sm:$0xff]
    %v58 = vld [vmem:[%s3] sm:$0xff]
    %v59 = vld [vmem:[%s3 + $0x8] sm:$0xff]
    %v60 = vld [vmem:[%s3 + $0x10] sm:$0xff]
    %v61 = vld [vmem:[%s3 + $0x18] sm:$0xff]
    %v62 = vld [vmem:[#allocation2] sm:$0xff]
    %v63 = vld [vmem:[#allocation2 + $0x8] sm:$0xff]
    %v64 = vld [vmem:[#allocation2 + $0x10] sm:$0xff]
    %v65 = vld [vmem:[#allocation2 + $0x18] sm:$0xff]
    %67 = vset.pattern.permute.xlu0 0
    %68 = vperm.xlu0 %67, %v58
    %v69 = vpop.permute.xlu0 %68
    %72 = vset.pattern.permute.xlu0 0
    %73 = vperm.xlu0 %72, %v59
    %v74 = vpop.permute.xlu0 %73
    %77 = vset.pattern.permute.xlu0 0
    %78 = vperm.xlu0 %77, %v60
    %v79 = vpop.permute.xlu0 %78
    %82 = vset.pattern.permute.xlu0 0
    %83 = vperm.xlu0 %82, %v61
    %v84 = vpop.permute.xlu0 %83
    %vm86 = vcmask 261120
    %v88 = vsel %vm86, %v50, 0
    %v91 = vsel %vm86, %v51, 0
    %v94 = vsel %vm86, %v52, 0
    %v97 = vsel %vm86, %v53, 0
    %99 = vmatpush.msra.mxu0 0.0
    %100 = vmatpush.msra.mxu0 0.0
    %101 = vmatpush.msra.mxu0 0.0
    %102 = vmatpush.msra.mxu0 0.0
    %103 = vmatpush.msra.mxu0 0.0
    %104 = vmatpush.msra.mxu0 0.0
    %105 = vmatpush.msra.mxu0 0.0
    %106 = vmatpush.msra.mxu0 0.0
    %107 = vmatpush.msra.mxu0 0.0
    %108 = vmatpush.msra.mxu0 0.0
    %109 = vmatpush.msra.mxu0 0.0
    %110 = vmatpush.msra.mxu0 0.0
    %111 = vmatpush.msra.mxu0 %v65
    %112 = vmatpush.msra.mxu0 %v64
    %113 = vmatpush.msra.mxu0 %v63
    %114 = vmatpush.msra.mxu0 %v62
    %115 = vmatmul.f32.gmra.mxu0 %v88
    %v116 = vpop.f32.mrf.mxu0
    %v117 = vadd.f32 %v69, %v116
    %118 = vmatmul.f32.gmra.mxu0 %v91
    %v119 = vpop.f32.mrf.mxu0
    %v120 = vadd.f32 %v74, %v119
    %121 = vmatmul.f32.gmra.mxu0 %v94
    %v122 = vpop.f32.mrf.mxu0
    %v123 = vadd.f32 %v79, %v122
    %124 = vmatmul.f32.gmra.mxu0 %v97
    %v125 = vpop.f32.mrf.mxu0
    %v126 = vadd.f32 %v84, %v125
    %127 = vdwg.mxu0
    %v128 = vadd.f32 %v117, %v120
    %v129 = vadd.f32 %v128, %v123
    %v130 = vadd.f32 %v129, %v126
    %v131 = vrot.slane %v130, 4
    %v132 = vadd.f32 %v130, %v131
    %v133 = vrot.slane %v132, 2
    %v134 = vadd.f32 %v132, %v133
    %v135 = vrot.slane %v134, 1
    %v136 = vadd.f32 %v134, %v135
    %v137 = vmul.f32 %v136, 0.03125
    %v138 = vmul.f32 %v117, %v117
    %v139 = vmul.f32 %v120, %v120
    %v140 = vmul.f32 %v123, %v123
    %v141 = vmul.f32 %v126, %v126
    %v142 = vadd.f32 %v138, %v139
    %v143 = vadd.f32 %v142, %v140
    %v144 = vadd.f32 %v143, %v141
    %v145 = vrot.slane %v144, 4
    %v146 = vadd.f32 %v144, %v145
    %v147 = vrot.slane %v146, 2
    %v148 = vadd.f32 %v146, %v147
    %v149 = vrot.slane %v148, 1
    %v150 = vadd.f32 %v148, %v149
    %v151 = vmul.f32 %v150, 0.03125
    %v152 = vmul.f32 %v137, %v137
    %v153 = vsub.f32 %v151, %v152
    %v154 = vmax.f32 %v153, 0.0
    %v155 = vsub.f32 %v117, %v137
    %v156 = vsub.f32 %v120, %v137
    %v157 = vsub.f32 %v123, %v137
    %v158 = vsub.f32 %v126, %v137
    %v159 = vadd.f32 %v154, 1e-08
    %v160 = vrsqrt.pop %v159
    %v161 = vmul.f32 %v160, %v159
    %v162 = vmul.f32 %v161, %v160
    %v163 = vmul.f32 0.5, %v162
    %v164 = vsub.f32 1.5, %v163
    %v165 = vmul.f32 %v160, %v164
    %vm166 = vweird.f32 %v159
    %vm167 = vweird.f32 %v160
    %vm168 = vmor %vm166, %vm167
    %v169 = vsel %vm168, %v160, %v165
    %v170 = vmul.f32 %v155, %v169
    %v171 = vmul.f32 %v156, %v169
    %v172 = vmul.f32 %v157, %v169
    %v173 = vmul.f32 %v158, %v169
    %174 = vset.pattern.permute.xlu0 1
    %175 = vperm.xlu0 %174, %v58
    %v176 = vpop.permute.xlu0 %175
    %178 = vset.pattern.permute.xlu0 1
    %179 = vperm.xlu0 %178, %v59
    %v180 = vpop.permute.xlu0 %179
    %182 = vset.pattern.permute.xlu0 1
    %183 = vperm.xlu0 %182, %v60
    %v184 = vpop.permute.xlu0 %183
    %186 = vset.pattern.permute.xlu0 1
    %187 = vperm.xlu0 %186, %v61
    %v188 = vpop.permute.xlu0 %187
    %v190 = vmul.f32 %v170, %v176
    %v191 = vmul.f32 %v171, %v180
    %v192 = vmul.f32 %v172, %v184
    %v193 = vmul.f32 %v173, %v188
    %194 = vset.pattern.permute.xlu0 2
    %195 = vperm.xlu0 %194, %v58
    %v196 = vpop.permute.xlu0 %195
    %198 = vset.pattern.permute.xlu0 2
    %199 = vperm.xlu0 %198, %v59
    %v200 = vpop.permute.xlu0 %199
    %202 = vset.pattern.permute.xlu0 2
    %203 = vperm.xlu0 %202, %v60
    %v204 = vpop.permute.xlu0 %203
    %206 = vset.pattern.permute.xlu0 2
    %207 = vperm.xlu0 %206, %v61
    %v208 = vpop.permute.xlu0 %207
    %v210 = vadd.f32 %v190, %v196
    %v211 = vadd.f32 %v191, %v200
    %v212 = vadd.f32 %v192, %v204
    %v213 = vadd.f32 %v193, %v208
    %v214 = vadd.f32 %v210, %v62
    %v215 = vadd.f32 %v211, %v63
    %v216 = vadd.f32 %v212, %v64
    %v217 = vadd.f32 %v213, %v65
    %218 = vset.pattern.permute.xlu0 3
    %219 = vperm.xlu0 %218, %v58
    %v220 = vpop.permute.xlu0 %219
    %222 = vset.pattern.permute.xlu0 3
    %223 = vperm.xlu0 %222, %v59
    %v224 = vpop.permute.xlu0 %223
    %226 = vset.pattern.permute.xlu0 3
    %227 = vperm.xlu0 %226, %v60
    %v228 = vpop.permute.xlu0 %227
    %230 = vset.pattern.permute.xlu0 3
    %231 = vperm.xlu0 %230, %v61
    %v232 = vpop.permute.xlu0 %231
    %v235 = vsel %vm86, %v54, 0
    %v238 = vsel %vm86, %v55, 0
    %v241 = vsel %vm86, %v56, 0
    %v244 = vsel %vm86, %v57, 0
    %246 = vmatpush.msra.mxu0 0.0
    %247 = vmatpush.msra.mxu0 0.0
    %248 = vmatpush.msra.mxu0 0.0
    %249 = vmatpush.msra.mxu0 0.0
    %250 = vmatpush.msra.mxu0 0.0
    %251 = vmatpush.msra.mxu0 0.0
    %252 = vmatpush.msra.mxu0 0.0
    %253 = vmatpush.msra.mxu0 0.0
    %254 = vmatpush.msra.mxu0 0.0
    %255 = vmatpush.msra.mxu0 0.0
    %256 = vmatpush.msra.mxu0 0.0
    %257 = vmatpush.msra.mxu0 0.0
    %258 = vmatpush.msra.mxu0 %v217
    %259 = vmatpush.msra.mxu0 %v216
    %260 = vmatpush.msra.mxu0 %v215
    %261 = vmatpush.msra.mxu0 %v214
    %262 = vmatmul.f32.gmra.mxu0 %v235
    %v263 = vpop.f32.mrf.mxu0
    %v264 = vadd.f32 %v220, %v263
    %265 = vmatmul.f32.gmra.mxu0 %v238
    %v266 = vpop.f32.mrf.mxu0
    %v267 = vadd.f32 %v224, %v266
    %268 = vmatmul.f32.gmra.mxu0 %v241
    %v269 = vpop.f32.mrf.mxu0
    %v270 = vadd.f32 %v228, %v269
    %271 = vmatmul.f32.gmra.mxu0 %v244
    %v272 = vpop.f32.mrf.mxu0
    %v273 = vadd.f32 %v232, %v272
    %274 = vdwg.mxu0
    %v275 = vadd.f32 %v264, %v267
    %v276 = vadd.f32 %v275, %v270
    %v277 = vadd.f32 %v276, %v273
    %v278 = vrot.slane %v277, 4
    %v279 = vadd.f32 %v277, %v278
    %v280 = vrot.slane %v279, 2
    %v281 = vadd.f32 %v279, %v280
    %v282 = vrot.slane %v281, 1
    %v283 = vadd.f32 %v281, %v282
    %v284 = vmul.f32 %v283, 0.03125
    %v285 = vmul.f32 %v264, %v264
    %v286 = vmul.f32 %v267, %v267
    %v287 = vmul.f32 %v270, %v270
    %v288 = vmul.f32 %v273, %v273
    %v289 = vadd.f32 %v285, %v286
    %v290 = vadd.f32 %v289, %v287
    %v291 = vadd.f32 %v290, %v288
    %v292 = vrot.slane %v291, 4
    %v293 = vadd.f32 %v291, %v292
    %v294 = vrot.slane %v293, 2
    %v295 = vadd.f32 %v293, %v294
    %v296 = vrot.slane %v295, 1
    %v297 = vadd.f32 %v295, %v296
    %v298 = vmul.f32 %v297, 0.03125
    %v299 = vmul.f32 %v284, %v284
    %v300 = vsub.f32 %v298, %v299
    %v301 = vmax.f32 %v300, 0.0
    %v302 = vsub.f32 %v264, %v284
    %v303 = vsub.f32 %v267, %v284
    %v304 = vsub.f32 %v270, %v284
    %v305 = vsub.f32 %v273, %v284
    %v306 = vadd.f32 %v301, 1e-08
    %v307 = vrsqrt.pop %v306
    %v308 = vmul.f32 %v307, %v306
    %v309 = vmul.f32 %v308, %v307
    %v310 = vmul.f32 0.5, %v309
    %v311 = vsub.f32 1.5, %v310
    %v312 = vmul.f32 %v307, %v311
    %vm313 = vweird.f32 %v306
    %vm314 = vweird.f32 %v307
    %vm315 = vmor %vm313, %vm314
    %v316 = vsel %vm315, %v307, %v312
    %v317 = vmul.f32 %v302, %v316
    %v318 = vmul.f32 %v303, %v316
    %v319 = vmul.f32 %v304, %v316
    %v320 = vmul.f32 %v305, %v316
    %321 = vset.pattern.permute.xlu0 4
    %322 = vperm.xlu0 %321, %v58
    %v323 = vpop.permute.xlu0 %322
    %325 = vset.pattern.permute.xlu0 4
    %326 = vperm.xlu0 %325, %v59
    %v327 = vpop.permute.xlu0 %326
    %329 = vset.pattern.permute.xlu0 4
    %330 = vperm.xlu0 %329, %v60
    %v331 = vpop.permute.xlu0 %330
    %333 = vset.pattern.permute.xlu0 4
    %334 = vperm.xlu0 %333, %v61
    %v335 = vpop.permute.xlu0 %334
    %v337 = vmul.f32 %v317, %v323
    %v338 = vmul.f32 %v318, %v327
    %v339 = vmul.f32 %v319, %v331
    %v340 = vmul.f32 %v320, %v335
    %341 = vset.pattern.permute.xlu0 5
    %342 = vperm.xlu0 %341, %v58
    %v343 = vpop.permute.xlu0 %342
    %345 = vset.pattern.permute.xlu0 5
    %346 = vperm.xlu0 %345, %v59
    %v347 = vpop.permute.xlu0 %346
    %349 = vset.pattern.permute.xlu0 5
    %350 = vperm.xlu0 %349, %v60
    %v351 = vpop.permute.xlu0 %350
    %353 = vset.pattern.permute.xlu0 5
    %354 = vperm.xlu0 %353, %v61
    %v355 = vpop.permute.xlu0 %354
    %v357 = vadd.f32 %v337, %v343
    %v358 = vadd.f32 %v338, %v347
    %v359 = vadd.f32 %v339, %v351
    %v360 = vadd.f32 %v340, %v355
    %v361 = vadd.f32 %v357, %v62
    %v362 = vadd.f32 %v358, %v63
    %v363 = vadd.f32 %v359, %v64
    %v364 = vadd.f32 %v360, %v65
    %365 = vst [vmem:[#allocation7] sm:$0xff] %v361
    %366 = vst [vmem:[#allocation7 + $0x8] sm:$0xff] %v362
    %367 = vst [vmem:[#allocation7 + $0x10] sm:$0xff] %v363
    %368 = vst [vmem:[#allocation7 + $0x18] sm:$0xff] %v364
    %s369 = scalar_lea.vmem [#allocation2], 32
    %v370 = vld [vmem:[%s369] sm:$0xff]
    %v371 = vld [vmem:[%s369 + $0x8] sm:$0xff]
    %v372 = vld [vmem:[%s369 + $0x10] sm:$0xff]
    %v373 = vld [vmem:[%s369 + $0x18] sm:$0xff]
    %374 = vmatpush.msra.mxu0 0.0
    %375 = vmatpush.msra.mxu0 0.0
    %376 = vmatpush.msra.mxu0 0.0
    %377 = vmatpush.msra.mxu0 0.0
    %378 = vmatpush.msra.mxu0 0.0
    %379 = vmatpush.msra.mxu0 0.0
    %380 = vmatpush.msra.mxu0 0.0
    %381 = vmatpush.msra.mxu0 0.0
    %382 = vmatpush.msra.mxu0 0.0
    %383 = vmatpush.msra.mxu0 0.0
    %384 = vmatpush.msra.mxu0 0.0
    %385 = vmatpush.msra.mxu0 0.0
    %386 = vmatpush.msra.mxu0 %v373
    %387 = vmatpush.msra.mxu0 %v372
    %388 = vmatpush.msra.mxu0 %v371
    %389 = vmatpush.msra.mxu0 %v370
    %390 = vmatmul.f32.gmra.mxu0 %v88
    %v391 = vpop.f32.mrf.mxu0
    %v392 = vadd.f32 %v69, %v391
    %393 = vmatmul.f32.gmra.mxu0 %v91
    %v394 = vpop.f32.mrf.mxu0
    %v395 = vadd.f32 %v74, %v394
    %396 = vmatmul.f32.gmra.mxu0 %v94
    %v397 = vpop.f32.mrf.mxu0
    %v398 = vadd.f32 %v79, %v397
    %399 = vmatmul.f32.gmra.mxu0 %v97
    %v400 = vpop.f32.mrf.mxu0
    %v401 = vadd.f32 %v84, %v400
    %402 = vdwg.mxu0
    %v403 = vadd.f32 %v392, %v395
    %v404 = vadd.f32 %v403, %v398
    %v405 = vadd.f32 %v404, %v401
    %v406 = vrot.slane %v405, 4
    %v407 = vadd.f32 %v405, %v406
    %v408 = vrot.slane %v407, 2
    %v409 = vadd.f32 %v407, %v408
    %v410 = vrot.slane %v409, 1
    %v411 = vadd.f32 %v409, %v410
    %v412 = vmul.f32 %v411, 0.03125
    %v413 = vmul.f32 %v392, %v392
    %v414 = vmul.f32 %v395, %v395
    %v415 = vmul.f32 %v398, %v398
    %v416 = vmul.f32 %v401, %v401
    %v417 = vadd.f32 %v413, %v414
    %v418 = vadd.f32 %v417, %v415
    %v419 = vadd.f32 %v418, %v416
    %v420 = vrot.slane %v419, 4
    %v421 = vadd.f32 %v419, %v420
    %v422 = vrot.slane %v421, 2
    %v423 = vadd.f32 %v421, %v422
    %v424 = vrot.slane %v423, 1
    %v425 = vadd.f32 %v423, %v424
    %v426 = vmul.f32 %v425, 0.03125
    %v427 = vmul.f32 %v412, %v412
    %v428 = vsub.f32 %v426, %v427
    %v429 = vmax.f32 %v428, 0.0
    %v430 = vsub.f32 %v392, %v412
    %v431 = vsub.f32 %v395, %v412
    %v432 = vsub.f32 %v398, %v412
    %v433 = vsub.f32 %v401, %v412
    %v434 = vadd.f32 %v429, 1e-08
    %v435 = vrsqrt.pop %v434
    %v436 = vmul.f32 %v435, %v434
    %v437 = vmul.f32 %v436, %v435
    %v438 = vmul.f32 0.5, %v437
    %v439 = vsub.f32 1.5, %v438
    %v440 = vmul.f32 %v435, %v439
    %vm441 = vweird.f32 %v434
    %vm442 = vweird.f32 %v435
    %vm443 = vmor %vm441, %vm442
    %v444 = vsel %vm443, %v435, %v440
    %v445 = vmul.f32 %v430, %v444
    %v446 = vmul.f32 %v431, %v444
    %v447 = vmul.f32 %v432, %v444
    %v448 = vmul.f32 %v433, %v444
    %v449 = vmul.f32 %v445, %v176
    %v450 = vmul.f32 %v446, %v180
    %v451 = vmul.f32 %v447, %v184
    %v452 = vmul.f32 %v448, %v188
    %v453 = vadd.f32 %v449, %v196
    %v454 = vadd.f32 %v450, %v200
    %v455 = vadd.f32 %v451, %v204
    %v456 = vadd.f32 %v452, %v208
    %v457 = vadd.f32 %v453, %v370
    %v458 = vadd.f32 %v454, %v371
    %v459 = vadd.f32 %v455, %v372
    %v460 = vadd.f32 %v456, %v373
    %461 = vmatpush.msra.mxu0 0.0
    %462 = vmatpush.msra.mxu0 0.0
    %463 = vmatpush.msra.mxu0 0.0
    %464 = vmatpush.msra.mxu0 0.0
    %465 = vmatpush.msra.mxu0 0.0
    %466 = vmatpush.msra.mxu0 0.0
    %467 = vmatpush.msra.mxu0 0.0
    %468 = vmatpush.msra.mxu0 0.0
    %469 = vmatpush.msra.mxu0 0.0
    %470 = vmatpush.msra.mxu0 0.0
    %471 = vmatpush.msra.mxu0 0.0
    %472 = vmatpush.msra.mxu0 0.0
    %473 = vmatpush.msra.mxu0 %v460
    %474 = vmatpush.msra.mxu0 %v459
    %475 = vmatpush.msra.mxu0 %v458
    %476 = vmatpush.msra.mxu0 %v457
    %477 = vmatmul.f32.gmra.mxu0 %v235
    %v478 = vpop.f32.mrf.mxu0
    %v479 = vadd.f32 %v220, %v478
    %480 = vmatmul.f32.gmra.mxu0 %v238
    %v481 = vpop.f32.mrf.mxu0
    %v482 = vadd.f32 %v224, %v481
    %483 = vmatmul.f32.gmra.mxu0 %v241
    %v484 = vpop.f32.mrf.mxu0
    %v485 = vadd.f32 %v228, %v484
    %486 = vmatmul.f32.gmra.mxu0 %v244
    %v487 = vpop.f32.mrf.mxu0
    %v488 = vadd.f32 %v232, %v487
    %489 = vdwg.mxu0
    %v490 = vadd.f32 %v479, %v482
    %v491 = vadd.f32 %v490, %v485
    %v492 = vadd.f32 %v491, %v488
    %v493 = vrot.slane %v492, 4
    %v494 = vadd.f32 %v492, %v493
    %v495 = vrot.slane %v494, 2
    %v496 = vadd.f32 %v494, %v495
    %v497 = vrot.slane %v496, 1
    %v498 = vadd.f32 %v496, %v497
    %v499 = vmul.f32 %v498, 0.03125
    %v500 = vmul.f32 %v479, %v479
    %v501 = vmul.f32 %v482, %v482
    %v502 = vmul.f32 %v485, %v485
    %v503 = vmul.f32 %v488, %v488
    %v504 = vadd.f32 %v500, %v501
    %v505 = vadd.f32 %v504, %v502
    %v506 = vadd.f32 %v505, %v503
    %v507 = vrot.slane %v506, 4
    %v508 = vadd.f32 %v506, %v507
    %v509 = vrot.slane %v508, 2
    %v510 = vadd.f32 %v508, %v509
    %v511 = vrot.slane %v510, 1
    %v512 = vadd.f32 %v510, %v511
    %v513 = vmul.f32 %v512, 0.03125
    %v514 = vmul.f32 %v499, %v499
    %v515 = vsub.f32 %v513, %v514
    %v516 = vmax.f32 %v515, 0.0
    %v517 = vsub.f32 %v479, %v499
    %v518 = vsub.f32 %v482, %v499
    %v519 = vsub.f32 %v485, %v499
    %v520 = vsub.f32 %v488, %v499
    %v521 = vadd.f32 %v516, 1e-08
    %v522 = vrsqrt.pop %v521
    %v523 = vmul.f32 %v522, %v521
    %v524 = vmul.f32 %v523, %v522
    %v525 = vmul.f32 0.5, %v524
    %v526 = vsub.f32 1.5, %v525
    %v527 = vmul.f32 %v522, %v526
    %vm528 = vweird.f32 %v521
    %vm529 = vweird.f32 %v522
    %vm530 = vmor %vm528, %vm529
    %v531 = vsel %vm530, %v522, %v527
    %v532 = vmul.f32 %v517, %v531
    %v533 = vmul.f32 %v518, %v531
    %v534 = vmul.f32 %v519, %v531
    %v535 = vmul.f32 %v520, %v531
    %v536 = vmul.f32 %v532, %v323
    %v537 = vmul.f32 %v533, %v327
    %v538 = vmul.f32 %v534, %v331
    %v539 = vmul.f32 %v535, %v335
    %v540 = vadd.f32 %v536, %v343
    %v541 = vadd.f32 %v537, %v347
    %v542 = vadd.f32 %v538, %v351
    %v543 = vadd.f32 %v539, %v355
    %v544 = vadd.f32 %v540, %v370
    %v545 = vadd.f32 %v541, %v371
    %v546 = vadd.f32 %v542, %v372
    %v547 = vadd.f32 %v543, %v373
    %s548 = scalar_lea.vmem [#allocation7], 32
    %549 = vst [vmem:[%s548] sm:$0xff] %v544
    %550 = vst [vmem:[%s548 + $0x8] sm:$0xff] %v545
    %551 = vst [vmem:[%s548 + $0x10] sm:$0xff] %v546
    %552 = vst [vmem:[%s548 + $0x18] sm:$0xff] %v547
    // Predicated region
    $region26: #{tpu_custom_call.1} parent=1 // pred_check
      _
    $region27: #{tpu_custom_call.1} parent=1 // pred_check_branch
      %554 = sbr.rel (0) target = $region29
    $region28: #{tpu_custom_call.1} parent=1 // pred_region
      %556 = vsyncadd [#allocation4], 0
      %s557 = sshll.u32 [#allocation7], 4
      %s558 = int_to_ptr.vmem [resolvable:$true] %s557
      %s559 = sshll.u32 %s4, 4
      %s560 = int_to_ptr.hbm [resolvable:$true] %s559
      %565 = dma.vmem_to_hbm [thread:$0]  %s558, 1024, %s560, [#allocation4], 128, 128, 8
    $region29: #{tpu_custom_call.1} parent=1 // pred_fallthru
      _
    // Predicated region
    $region30: #{tpu_custom_call.1} parent=1 // pred_check
      _
    $region31: #{tpu_custom_call.1} parent=1 // pred_check_branch
      %567 = sbr.rel (0) target = $region33
    $region32: #{tpu_custom_call.1} parent=1 // pred_region
      %569 = dma.done [#allocation4], 1024
    $region33: #{tpu_custom_call.1} parent=1 // pred_fallthru
      _
    %570 = vsyncpa [#allocation3], 1
    %571 = vsyncpa [#allocation6], 1
    %572 = vsyncpa [#allocation4], 1

// kernel: tpu_custom_call.1
$region0: #{tpu_custom_call.1}
  #allocation0 [shape = 'u32[]', space=smem, size = 0x4, offset = 0x4, fixed_abs, tag = 'smem constant byte address 0x4 - core index']
  #allocation1 [shape = 'u32[72,128]{1,0:T(1,128)}', space=vmem, size = 0x9000, scoped, tag = 'internal scratch']
  %s0 = inlined_call_operand.hbm [shape: f32[2,32,128], index: 0, kind: input, shape index: {}]
  %s1 = inlined_call_operand.vmem [shape: f32[32,32], index: 1, kind: input, shape index: {}]
  %s2 = inlined_call_operand.hbm [shape: f32[32,32], index: 2, kind: input, shape index: {}]
  %s3 = inlined_call_operand.vmem [shape: f32[32,8], index: 3, kind: input, shape index: {}]
  %s4 = inlined_call_operand.hbm [shape: f32[2,32,128], index: 4, kind: output, shape index: {}]
  %s5 = sld [smem:[#allocation0]]
  $region34: #{tpu_custom_call.1} parent=0
    _
  %s7 = ssub.s32 1, %s5
  %s8 = scalar_select 0, %s7, %s5
  $region1: #{tpu_custom_call.1} parent=0
    #allocation2 [shape = 'u8[32768]{0}', space=vmem, size = 0x8000, scoped, tag = 'input window, operand 0, single buffered']
    #allocation3 [shape = 's32[1]{0}', space=sflag, size = 0x4, scoped, tag = 'scoped memory for tpu_custom_call.1']
    #allocation4 [shape = 's32[1]{0}', space=sflag, size = 0x4, scoped, tag = 'scoped memory for tpu_custom_call.1']
    #allocation5 [shape = 'u8[16384]{0}', space=vmem, size = 0x4000, scoped, tag = 'input window, operand 2, single buffered']
    #allocation6 [shape = 's32[1]{0}', space=sflag, size = 0x4, scoped, tag = 'scoped memory for tpu_custom_call.1']
    #allocation7 [shape = 'u8[32768]{0}', space=vmem, size = 0x8000, scoped, tag = 'output window, operand 0, single buffered']
    %9 = vsyncpa [#allocation3], 0
    %10 = vsyncpa [#allocation6], 0
    %11 = vsyncpa [#allocation4], 0
    // Predicated region
    $region2: #{tpu_custom_call.1} parent=1 // pred_check
      _
    $region3: #{tpu_custom_call.1} parent=1 // pred_check_branch
      %13 = sbr.rel (0) target = $region5
    $region4: #{tpu_custom_call.1} parent=1 // pred_region
      %15 = vsyncadd [#allocation3], 0
      %s16 = sshll.u32 %s0, 4
      %s17 = int_to_ptr.hbm [resolvable:$true] %s16
      %s18 = sshll.u32 [#allocation2], 4
      %s19 = int_to_ptr.vmem [resolvable:$true] %s18
      %24 = dma.hbm_to_vmem [thread:$0]  %s17, 1024, %s19, [#allocation3], 128, 128, 8
    $region5: #{tpu_custom_call.1} parent=1 // pred_fallthru
      _
    // Predicated region
    $region6: #{tpu_custom_call.1} parent=1 // pred_check
      _
    $region7: #{tpu_custom_call.1} parent=1 // pred_check_branch
      %26 = sbr.rel (0) target = $region9
    $region8: #{tpu_custom_call.1} parent=1 // pred_region
      _
    $region9: #{tpu_custom_call.1} parent=1 // pred_fallthru
      _
    // Predicated region
    $region10: #{tpu_custom_call.1} parent=1 // pred_check
      _
    $region11: #{tpu_custom_call.1} parent=1 // pred_check_branch
      %28 = sbr.rel (0) target = $region13
    $region12: #{tpu_custom_call.1} parent=1 // pred_region
      %30 = vsyncadd [#allocation6], 0
      %s31 = sshll.u32 %s2, 4
      %s32 = int_to_ptr.hbm [resolvable:$true] %s31
      %s33 = sshll.u32 [#allocation5], 4
      %s34 = int_to_ptr.vmem [resolvable:$true] %s33
      %39 = dma.hbm_to_vmem [thread:$0]  %s32, 512, %s34, [#allocation6], 128, 128, 8
    $region13: #{tpu_custom_call.1} parent=1 // pred_fallthru
      _
    // Predicated region
    $region14: #{tpu_custom_call.1} parent=1 // pred_check
      _
    $region15: #{tpu_custom_call.1} parent=1 // pred_check_branch
      %41 = sbr.rel (0) target = $region17
    $region16: #{tpu_custom_call.1} parent=1 // pred_region
      _
    $region17: #{tpu_custom_call.1} parent=1 // pred_fallthru
      _
    // Predicated region
    $region18: #{tpu_custom_call.1} parent=1 // pred_check
      _
    $region19: #{tpu_custom_call.1} parent=1 // pred_check_branch
      %43 = sbr.rel (0) target = $region21
    $region20: #{tpu_custom_call.1} parent=1 // pred_region
      %45 = dma.done [#allocation3], 1024
    $region21: #{tpu_custom_call.1} parent=1 // pred_fallthru
      _
    // Predicated region
    $region22: #{tpu_custom_call.1} parent=1 // pred_check
      _
    $region23: #{tpu_custom_call.1} parent=1 // pred_check_branch
      %47 = sbr.rel (0) target = $region25
    $region24: #{tpu_custom_call.1} parent=1 // pred_region
      %49 = dma.done [#allocation6], 512
    $region25: #{tpu_custom_call.1} parent=1 // pred_fallthru
      _
    %v50 = vld [vmem:[%s1] sm:$0xff]
    %v51 = vld [vmem:[%s1 + $0x8] sm:$0xff]
    %v52 = vld [vmem:[%s1 + $0x10] sm:$0xff]
    %v53 = vld [vmem:[%s1 + $0x18] sm:$0xff]
    %v54 = vld [vmem:[#allocation5] sm:$0xff]
    %v55 = vld [vmem:[#allocation5 + $0x8] sm:$0xff]
    %v56 = vld [vmem:[#allocation5 + $0x10] sm:$0xff]
    %v57 = vld [vmem:[#allocation5 + $0x18] sm:$0xff]
    %v58 = vld [vmem:[%s3] sm:$0xff]
    %v59 = vld [vmem:[%s3 + $0x8] sm:$0xff]
    %v60 = vld [vmem:[%s3 + $0x10] sm:$0xff]
    %v61 = vld [vmem:[%s3 + $0x18] sm:$0xff]
    %v62 = vld [vmem:[#allocation2] sm:$0xff]
    %v63 = vld [vmem:[#allocation2 + $0x8] sm:$0xff]
    %v64 = vld [vmem:[#allocation2 + $0x10] sm:$0xff]
    %v65 = vld [vmem:[#allocation2 + $0x18] sm:$0xff]
    %67 = vset.pattern.permute.xlu0 0
    %68 = vperm.xlu0 %67, %v58
    %v69 = vpop.permute.xlu0 %68
    %72 = vset.pattern.permute.xlu0 0
    %73 = vperm.xlu0 %72, %v59
    %v74 = vpop.permute.xlu0 %73
    %77 = vset.pattern.permute.xlu0 0
    %78 = vperm.xlu0 %77, %v60
    %v79 = vpop.permute.xlu0 %78
    %82 = vset.pattern.permute.xlu0 0
    %83 = vperm.xlu0 %82, %v61
    %v84 = vpop.permute.xlu0 %83
    %vm86 = vcmask 261120
    %v88 = vsel %vm86, %v50, 0
    %v91 = vsel %vm86, %v51, 0
    %v94 = vsel %vm86, %v52, 0
    %v97 = vsel %vm86, %v53, 0
    %99 = vmatpush.msra.mxu0 0.0
    %100 = vmatpush.msra.mxu0 0.0
    %101 = vmatpush.msra.mxu0 0.0
    %102 = vmatpush.msra.mxu0 0.0
    %103 = vmatpush.msra.mxu0 0.0
    %104 = vmatpush.msra.mxu0 0.0
    %105 = vmatpush.msra.mxu0 0.0
    %106 = vmatpush.msra.mxu0 0.0
    %107 = vmatpush.msra.mxu0 0.0
    %108 = vmatpush.msra.mxu0 0.0
    %109 = vmatpush.msra.mxu0 0.0
    %110 = vmatpush.msra.mxu0 0.0
    %111 = vmatpush.msra.mxu0 %v65
    %112 = vmatpush.msra.mxu0 %v64
    %113 = vmatpush.msra.mxu0 %v63
    %114 = vmatpush.msra.mxu0 %v62
    %115 = vmatmul.f32.gmra.mxu0 %v88
    %v116 = vpop.f32.mrf.mxu0
    %v117 = vadd.f32 %v69, %v116
    %118 = vmatmul.f32.gmra.mxu0 %v91
    %v119 = vpop.f32.mrf.mxu0
    %v120 = vadd.f32 %v74, %v119
    %121 = vmatmul.f32.gmra.mxu0 %v94
    %v122 = vpop.f32.mrf.mxu0
    %v123 = vadd.f32 %v79, %v122
    %124 = vmatmul.f32.gmra.mxu0 %v97
    %v125 = vpop.f32.mrf.mxu0
    %v126 = vadd.f32 %v84, %v125
    %127 = vdwg.mxu0
    %v128 = vadd.f32 %v117, %v120
    %v129 = vadd.f32 %v128, %v123
    %v130 = vadd.f32 %v129, %v126
    %v131 = vrot.slane %v130, 4
    %v132 = vadd.f32 %v130, %v131
    %v133 = vrot.slane %v132, 2
    %v134 = vadd.f32 %v132, %v133
    %v135 = vrot.slane %v134, 1
    %v136 = vadd.f32 %v134, %v135
    %v137 = vmul.f32 %v136, 0.03125
    %v138 = vmul.f32 %v117, %v117
    %v139 = vmul.f32 %v120, %v120
    %v140 = vmul.f32 %v123, %v123
    %v141 = vmul.f32 %v126, %v126
    %v142 = vadd.f32 %v138, %v139
    %v143 = vadd.f32 %v142, %v140
    %v144 = vadd.f32 %v143, %v141
    %v145 = vrot.slane %v144, 4
    %v146 = vadd.f32 %v144, %v145
    %v147 = vrot.slane %v146, 2
    %v148 = vadd.f32 %v146, %v147
    %v149 = vrot.slane %v148, 1
    %v150 = vadd.f32 %v148, %v149
    %v151 = vmul.f32 %v150, 0.03125
    %v152 = vmul.f32 %v137, %v137
    %v153 = vsub.f32 %v151, %v152
    %v154 = vmax.f32 %v153, 0.0
    %v155 = vsub.f32 %v117, %v137
    %v156 = vsub.f32 %v120, %v137
    %v157 = vsub.f32 %v123, %v137
    %v158 = vsub.f32 %v126, %v137
    %v159 = vadd.f32 %v154, 1e-08
    %v160 = vrsqrt.pop %v159
    %v161 = vmul.f32 %v160, %v159
    %v162 = vmul.f32 %v161, %v160
    %v163 = vmul.f32 0.5, %v162
    %v164 = vsub.f32 1.5, %v163
    %v165 = vmul.f32 %v160, %v164
    %vm166 = vweird.f32 %v159
    %vm167 = vweird.f32 %v160
    %vm168 = vmor %vm166, %vm167
    %v169 = vsel %vm168, %v160, %v165
    %v170 = vmul.f32 %v155, %v169
    %v171 = vmul.f32 %v156, %v169
    %v172 = vmul.f32 %v157, %v169
    %v173 = vmul.f32 %v158, %v169
    %174 = vset.pattern.permute.xlu0 1
    %175 = vperm.xlu0 %174, %v58
    %v176 = vpop.permute.xlu0 %175
    %178 = vset.pattern.permute.xlu0 1
    %179 = vperm.xlu0 %178, %v59
    %v180 = vpop.permute.xlu0 %179
    %182 = vset.pattern.permute.xlu0 1
    %183 = vperm.xlu0 %182, %v60
    %v184 = vpop.permute.xlu0 %183
    %186 = vset.pattern.permute.xlu0 1
    %187 = vperm.xlu0 %186, %v61
    %v188 = vpop.permute.xlu0 %187
    %v190 = vmul.f32 %v170, %v176
    %v191 = vmul.f32 %v171, %v180
    %v192 = vmul.f32 %v172, %v184
    %v193 = vmul.f32 %v173, %v188
    %194 = vset.pattern.permute.xlu0 2
    %195 = vperm.xlu0 %194, %v58
    %v196 = vpop.permute.xlu0 %195
    %198 = vset.pattern.permute.xlu0 2
    %199 = vperm.xlu0 %198, %v59
    %v200 = vpop.permute.xlu0 %199
    %202 = vset.pattern.permute.xlu0 2
    %203 = vperm.xlu0 %202, %v60
    %v204 = vpop.permute.xlu0 %203
    %206 = vset.pattern.permute.xlu0 2
    %207 = vperm.xlu0 %206, %v61
    %v208 = vpop.permute.xlu0 %207
    %v210 = vadd.f32 %v190, %v196
    %v211 = vadd.f32 %v191, %v200
    %v212 = vadd.f32 %v192, %v204
    %v213 = vadd.f32 %v193, %v208
    %v214 = vadd.f32 %v210, %v62
    %v215 = vadd.f32 %v211, %v63
    %v216 = vadd.f32 %v212, %v64
    %v217 = vadd.f32 %v213, %v65
    %218 = vset.pattern.permute.xlu0 3
    %219 = vperm.xlu0 %218, %v58
    %v220 = vpop.permute.xlu0 %219
    %222 = vset.pattern.permute.xlu0 3
    %223 = vperm.xlu0 %222, %v59
    %v224 = vpop.permute.xlu0 %223
    %226 = vset.pattern.permute.xlu0 3
    %227 = vperm.xlu0 %226, %v60
    %v228 = vpop.permute.xlu0 %227
    %230 = vset.pattern.permute.xlu0 3
    %231 = vperm.xlu0 %230, %v61
    %v232 = vpop.permute.xlu0 %231
    %v235 = vsel %vm86, %v54, 0
    %v238 = vsel %vm86, %v55, 0
    %v241 = vsel %vm86, %v56, 0
    %v244 = vsel %vm86, %v57, 0
    %246 = vmatpush.msra.mxu0 0.0
    %247 = vmatpush.msra.mxu0 0.0
    %248 = vmatpush.msra.mxu0 0.0
    %249 = vmatpush.msra.mxu0 0.0
    %250 = vmatpush.msra.mxu0 0.0
    %251 = vmatpush.msra.mxu0 0.0
    %252 = vmatpush.msra.mxu0 0.0
    %253 = vmatpush.msra.mxu0 0.0
    %254 = vmatpush.msra.mxu0 0.0
    %255 = vmatpush.msra.mxu0 0.0
    %256 = vmatpush.msra.mxu0 0.0
    %257 = vmatpush.msra.mxu0 0.0
    %258 = vmatpush.msra.mxu0 %v217
    %259 = vmatpush.msra.mxu0 %v216
    %260 = vmatpush.msra.mxu0 %v215
    %261 = vmatpush.msra.mxu0 %v214
    %262 = vmatmul.f32.gmra.mxu0 %v235
    %v263 = vpop.f32.mrf.mxu0
    %v264 = vadd.f32 %v220, %v263
    %265 = vmatmul.f32.gmra.mxu0 %v238
    %v266 = vpop.f32.mrf.mxu0
    %v267 = vadd.f32 %v224, %v266
    %268 = vmatmul.f32.gmra.mxu0 %v241
    %v269 = vpop.f32.mrf.mxu0
    %v270 = vadd.f32 %v228, %v269
    %271 = vmatmul.f32.gmra.mxu0 %v244
    %v272 = vpop.f32.mrf.mxu0
    %v273 = vadd.f32 %v232, %v272
    %274 = vdwg.mxu0
    %v275 = vadd.f32 %v264, %v267
    %v276 = vadd.f32 %v275, %v270
    %v277 = vadd.f32 %v276, %v273
    %v278 = vrot.slane %v277, 4
    %v279 = vadd.f32 %v277, %v278
    %v280 = vrot.slane %v279, 2
    %v281 = vadd.f32 %v279, %v280
    %v282 = vrot.slane %v281, 1
    %v283 = vadd.f32 %v281, %v282
    %v284 = vmul.f32 %v283, 0.03125
    %v285 = vmul.f32 %v264, %v264
    %v286 = vmul.f32 %v267, %v267
    %v287 = vmul.f32 %v270, %v270
    %v288 = vmul.f32 %v273, %v273
    %v289 = vadd.f32 %v285, %v286
    %v290 = vadd.f32 %v289, %v287
    %v291 = vadd.f32 %v290, %v288
    %v292 = vrot.slane %v291, 4
    %v293 = vadd.f32 %v291, %v292
    %v294 = vrot.slane %v293, 2
    %v295 = vadd.f32 %v293, %v294
    %v296 = vrot.slane %v295, 1
    %v297 = vadd.f32 %v295, %v296
    %v298 = vmul.f32 %v297, 0.03125
    %v299 = vmul.f32 %v284, %v284
    %v300 = vsub.f32 %v298, %v299
    %v301 = vmax.f32 %v300, 0.0
    %v302 = vsub.f32 %v264, %v284
    %v303 = vsub.f32 %v267, %v284
    %v304 = vsub.f32 %v270, %v284
    %v305 = vsub.f32 %v273, %v284
    %v306 = vadd.f32 %v301, 1e-08
    %v307 = vrsqrt.pop %v306
    %v308 = vmul.f32 %v307, %v306
    %v309 = vmul.f32 %v308, %v307
    %v310 = vmul.f32 0.5, %v309
    %v311 = vsub.f32 1.5, %v310
    %v312 = vmul.f32 %v307, %v311
    %vm313 = vweird.f32 %v306
    %vm314 = vweird.f32 %v307
    %vm315 = vmor %vm313, %vm314
    %v316 = vsel %vm315, %v307, %v312
    %v317 = vmul.f32 %v302, %v316
    %v318 = vmul.f32 %v303, %v316
    %v319 = vmul.f32 %v304, %v316
    %v320 = vmul.f32 %v305, %v316
    %321 = vset.pattern.permute.xlu0 4
    %322 = vperm.xlu0 %321, %v58
    %v323 = vpop.permute.xlu0 %322
    %325 = vset.pattern.permute.xlu0 4
    %326 = vperm.xlu0 %325, %v59
    %v327 = vpop.permute.xlu0 %326
    %329 = vset.pattern.permute.xlu0 4
    %330 = vperm.xlu0 %329, %v60
    %v331 = vpop.permute.xlu0 %330
    %333 = vset.pattern.permute.xlu0 4
    %334 = vperm.xlu0 %333, %v61
    %v335 = vpop.permute.xlu0 %334
    %v337 = vmul.f32 %v317, %v323
    %v338 = vmul.f32 %v318, %v327
    %v339 = vmul.f32 %v319, %v331
    %v340 = vmul.f32 %v320, %v335
    %341 = vset.pattern.permute.xlu0 5
    %342 = vperm.xlu0 %341, %v58
    %v343 = vpop.permute.xlu0 %342
    %345 = vset.pattern.permute.xlu0 5
    %346 = vperm.xlu0 %345, %v59
    %v347 = vpop.permute.xlu0 %346
    %349 = vset.pattern.permute.xlu0 5
    %350 = vperm.xlu0 %349, %v60
    %v351 = vpop.permute.xlu0 %350
    %353 = vset.pattern.permute.xlu0 5
    %354 = vperm.xlu0 %353, %v61
    %v355 = vpop.permute.xlu0 %354
    %v357 = vadd.f32 %v337, %v343
    %v358 = vadd.f32 %v338, %v347
    %v359 = vadd.f32 %v339, %v351
    %v360 = vadd.f32 %v340, %v355
    %v361 = vadd.f32 %v357, %v62
    %v362 = vadd.f32 %v358, %v63
    %v363 = vadd.f32 %v359, %v64
    %v364 = vadd.f32 %v360, %v65
    %365 = vst [vmem:[#allocation7] sm:$0xff] %v361
    %366 = vst [vmem:[#allocation7 + $0x8] sm:$0xff] %v362
    %367 = vst [vmem:[#allocation7 + $0x10] sm:$0xff] %v363
    %368 = vst [vmem:[#allocation7 + $0x18] sm:$0xff] %v364
    %s369 = scalar_lea.vmem [#allocation2], 32
    %v370 = vld [vmem:[%s369] sm:$0xff]
    %v371 = vld [vmem:[%s369 + $0x8] sm:$0xff]
    %v372 = vld [vmem:[%s369 + $0x10] sm:$0xff]
    %v373 = vld [vmem:[%s369 + $0x18] sm:$0xff]
    %374 = vmatpush.msra.mxu0 0.0
    %375 = vmatpush.msra.mxu0 0.0
    %376 = vmatpush.msra.mxu0 0.0
    %377 = vmatpush.msra.mxu0 0.0
    %378 = vmatpush.msra.mxu0 0.0
    %379 = vmatpush.msra.mxu0 0.0
    %380 = vmatpush.msra.mxu0 0.0
    %381 = vmatpush.msra.mxu0 0.0
    %382 = vmatpush.msra.mxu0 0.0
    %383 = vmatpush.msra.mxu0 0.0
    %384 = vmatpush.msra.mxu0 0.0
    %385 = vmatpush.msra.mxu0 0.0
    %386 = vmatpush.msra.mxu0 %v373
    %387 = vmatpush.msra.mxu0 %v372
    %388 = vmatpush.msra.mxu0 %v371
    %389 = vmatpush.msra.mxu0 %v370
    %390 = vmatmul.f32.gmra.mxu0 %v88
    %v391 = vpop.f32.mrf.mxu0
    %v392 = vadd.f32 %v69, %v391
    %393 = vmatmul.f32.gmra.mxu0 %v91
    %v394 = vpop.f32.mrf.mxu0
    %v395 = vadd.f32 %v74, %v394
    %396 = vmatmul.f32.gmra.mxu0 %v94
    %v397 = vpop.f32.mrf.mxu0
    %v398 = vadd.f32 %v79, %v397
    %399 = vmatmul.f32.gmra.mxu0 %v97
    %v400 = vpop.f32.mrf.mxu0
    %v401 = vadd.f32 %v84, %v400
    %402 = vdwg.mxu0
    %v403 = vadd.f32 %v392, %v395
    %v404 = vadd.f32 %v403, %v398
    %v405 = vadd.f32 %v404, %v401
    %v406 = vrot.slane %v405, 4
    %v407 = vadd.f32 %v405, %v406
    %v408 = vrot.slane %v407, 2
    %v409 = vadd.f32 %v407, %v408
    %v410 = vrot.slane %v409, 1
    %v411 = vadd.f32 %v409, %v410
    %v412 = vmul.f32 %v411, 0.03125
    %v413 = vmul.f32 %v392, %v392
    %v414 = vmul.f32 %v395, %v395
    %v415 = vmul.f32 %v398, %v398
    %v416 = vmul.f32 %v401, %v401
    %v417 = vadd.f32 %v413, %v414
    %v418 = vadd.f32 %v417, %v415
    %v419 = vadd.f32 %v418, %v416
    %v420 = vrot.slane %v419, 4
    %v421 = vadd.f32 %v419, %v420
    %v422 = vrot.slane %v421, 2
    %v423 = vadd.f32 %v421, %v422
    %v424 = vrot.slane %v423, 1
    %v425 = vadd.f32 %v423, %v424
    %v426 = vmul.f32 %v425, 0.03125
    %v427 = vmul.f32 %v412, %v412
    %v428 = vsub.f32 %v426, %v427
    %v429 = vmax.f32 %v428, 0.0
    %v430 = vsub.f32 %v392, %v412
    %v431 = vsub.f32 %v395, %v412
    %v432 = vsub.f32 %v398, %v412
    %v433 = vsub.f32 %v401, %v412
    %v434 = vadd.f32 %v429, 1e-08
    %v435 = vrsqrt.pop %v434
    %v436 = vmul.f32 %v435, %v434
    %v437 = vmul.f32 %v436, %v435
    %v438 = vmul.f32 0.5, %v437
    %v439 = vsub.f32 1.5, %v438
    %v440 = vmul.f32 %v435, %v439
    %vm441 = vweird.f32 %v434
    %vm442 = vweird.f32 %v435
    %vm443 = vmor %vm441, %vm442
    %v444 = vsel %vm443, %v435, %v440
    %v445 = vmul.f32 %v430, %v444
    %v446 = vmul.f32 %v431, %v444
    %v447 = vmul.f32 %v432, %v444
    %v448 = vmul.f32 %v433, %v444
    %v449 = vmul.f32 %v445, %v176
    %v450 = vmul.f32 %v446, %v180
    %v451 = vmul.f32 %v447, %v184
    %v452 = vmul.f32 %v448, %v188
    %v453 = vadd.f32 %v449, %v196
    %v454 = vadd.f32 %v450, %v200
    %v455 = vadd.f32 %v451, %v204
    %v456 = vadd.f32 %v452, %v208
    %v457 = vadd.f32 %v453, %v370
    %v458 = vadd.f32 %v454, %v371
    %v459 = vadd.f32 %v455, %v372
    %v460 = vadd.f32 %v456, %v373
    %461 = vmatpush.msra.mxu0 0.0
    %462 = vmatpush.msra.mxu0 0.0
    %463 = vmatpush.msra.mxu0 0.0
    %464 = vmatpush.msra.mxu0 0.0
    %465 = vmatpush.msra.mxu0 0.0
    %466 = vmatpush.msra.mxu0 0.0
    %467 = vmatpush.msra.mxu0 0.0
    %468 = vmatpush.msra.mxu0 0.0
    %469 = vmatpush.msra.mxu0 0.0
    %470 = vmatpush.msra.mxu0 0.0
    %471 = vmatpush.msra.mxu0 0.0
    %472 = vmatpush.msra.mxu0 0.0
    %473 = vmatpush.msra.mxu0 %v460
    %474 = vmatpush.msra.mxu0 %v459
    %475 = vmatpush.msra.mxu0 %v458
    %476 = vmatpush.msra.mxu0 %v457
    %477 = vmatmul.f32.gmra.mxu0 %v235
    %v478 = vpop.f32.mrf.mxu0
    %v479 = vadd.f32 %v220, %v478
    %480 = vmatmul.f32.gmra.mxu0 %v238
    %v481 = vpop.f32.mrf.mxu0
    %v482 = vadd.f32 %v224, %v481
    %483 = vmatmul.f32.gmra.mxu0 %v241
    %v484 = vpop.f32.mrf.mxu0
    %v485 = vadd.f32 %v228, %v484
    %486 = vmatmul.f32.gmra.mxu0 %v244
    %v487 = vpop.f32.mrf.mxu0
    %v488 = vadd.f32 %v232, %v487
    %489 = vdwg.mxu0
    %v490 = vadd.f32 %v479, %v482
    %v491 = vadd.f32 %v490, %v485
    %v492 = vadd.f32 %v491, %v488
    %v493 = vrot.slane %v492, 4
    %v494 = vadd.f32 %v492, %v493
    %v495 = vrot.slane %v494, 2
    %v496 = vadd.f32 %v494, %v495
    %v497 = vrot.slane %v496, 1
    %v498 = vadd.f32 %v496, %v497
    %v499 = vmul.f32 %v498, 0.03125
    %v500 = vmul.f32 %v479, %v479
    %v501 = vmul.f32 %v482, %v482
    %v502 = vmul.f32 %v485, %v485
    %v503 = vmul.f32 %v488, %v488
    %v504 = vadd.f32 %v500, %v501
    %v505 = vadd.f32 %v504, %v502
    %v506 = vadd.f32 %v505, %v503
    %v507 = vrot.slane %v506, 4
    %v508 = vadd.f32 %v506, %v507
    %v509 = vrot.slane %v508, 2
    %v510 = vadd.f32 %v508, %v509
    %v511 = vrot.slane %v510, 1
    %v512 = vadd.f32 %v510, %v511
    %v513 = vmul.f32 %v512, 0.03125
    %v514 = vmul.f32 %v499, %v499
    %v515 = vsub.f32 %v513, %v514
    %v516 = vmax.f32 %v515, 0.0
    %v517 = vsub.f32 %v479, %v499
    %v518 = vsub.f32 %v482, %v499
    %v519 = vsub.f32 %v485, %v499
    %v520 = vsub.f32 %v488, %v499
    %v521 = vadd.f32 %v516, 1e-08
    %v522 = vrsqrt.pop %v521
    %v523 = vmul.f32 %v522, %v521
    %v524 = vmul.f32 %v523, %v522
    %v525 = vmul.f32 0.5, %v524
    %v526 = vsub.f32 1.5, %v525
    %v527 = vmul.f32 %v522, %v526
    %vm528 = vweird.f32 %v521
    %vm529 = vweird.f32 %v522
    %vm530 = vmor %vm528, %vm529
    %v531 = vsel %vm530, %v522, %v527
    %v532 = vmul.f32 %v517, %v531
    %v533 = vmul.f32 %v518, %v531
    %v534 = vmul.f32 %v519, %v531
    %v535 = vmul.f32 %v520, %v531
    %v536 = vmul.f32 %v532, %v323
    %v537 = vmul.f32 %v533, %v327
    %v538 = vmul.f32 %v534, %v331
    %v539 = vmul.f32 %v535, %v335
    %v540 = vadd.f32 %v536, %v343
    %v541 = vadd.f32 %v537, %v347
    %v542 = vadd.f32 %v538, %v351
    %v543 = vadd.f32 %v539, %v355
    %v544 = vadd.f32 %v540, %v370
    %v545 = vadd.f32 %v541, %v371
    %v546 = vadd.f32 %v542, %v372
    %v547 = vadd.f32 %v543, %v373
    %s548 = scalar_lea.vmem [#allocation7], 32
    %549 = vst [vmem:[%s548] sm:$0xff] %v544
    %550 = vst [vmem:[%s548 + $0x8] sm:$0xff] %v545
    %551 = vst [vmem:[%s548 + $0x10] sm:$0xff] %v546
    %552 = vst [vmem:[%s548 + $0x18] sm:$0xff] %v547
    // Predicated region
    $region26: #{tpu_custom_call.1} parent=1 // pred_check
      _
    $region27: #{tpu_custom_call.1} parent=1 // pred_check_branch
      %554 = sbr.rel (0) target = $region29
    $region28: #{tpu_custom_call.1} parent=1 // pred_region
      %556 = vsyncadd [#allocation4], 0
      %s557 = sshll.u32 [#allocation7], 4
      %s558 = int_to_ptr.vmem [resolvable:$true] %s557
      %s559 = sshll.u32 %s4, 4
      %s560 = int_to_ptr.hbm [resolvable:$true] %s559
      %565 = dma.vmem_to_hbm [thread:$0]  %s558, 1024, %s560, [#allocation4], 128, 128, 8
    $region29: #{tpu_custom_call.1} parent=1 // pred_fallthru
      _
    // Predicated region
    $region30: #{tpu_custom_call.1} parent=1 // pred_check
      _
    $region31: #{tpu_custom_call.1} parent=1 // pred_check_branch
      %567 = sbr.rel (0) target = $region33
    $region32: #{tpu_custom_call.1} parent=1 // pred_region
      %569 = dma.done [#allocation4], 1024
    $region33: #{tpu_custom_call.1} parent=1 // pred_fallthru
      _
    %570 = vsyncpa [#allocation3], 1
    %571 = vsyncpa [#allocation6], 1
    %572 = vsyncpa [#allocation4], 1

</llo_original>
